<compile_context>
chip_gen: v6e
topology: v6e:2x2x1
jax: 0.10.0
libtpu: 0.0.40
codegen_flags: <defaults>
</compile_context>

<pallas_src>
import functools

import jax
import jax.numpy as jnp
from jax.experimental import pallas as pl
from jax.experimental.pallas import tpu as pltpu


# ----------------------------- kernel helpers ------------------------------

def _silu(v):
    return v * jax.nn.sigmoid(v)


# --------------------------------- kernel ----------------------------------

def resnet_block_kernel(x_ref, temb_ref,
                        w1_ref, b1_ref, g1_ref, be1_ref,
                        w2_ref, b2_ref, g2_ref, be2_ref,
                        gmap_ref, gmapt_ref,
                        *rest, n_per_group, eps, has_res_conv):
    if has_res_conv:
        wr_ref, br_ref, o_ref = rest
    else:
        (o_ref,) = rest

    x = x_ref[0]                                    # (dim, L) f32
    L = x.shape[1]
    Gmap = gmap_ref[...]                            # (C, groups) f32 one-hot
    GmapT = gmapt_ref[...]                          # (groups, C)

    # edge masks for the k=3 taps, built once and shared by both convs
    lane = jax.lax.broadcasted_iota(jnp.int32, (1, L), 1)
    lmask = (lane > 0).astype(jnp.float32)          # zero in column 0
    rmask = (lane < L - 1).astype(jnp.float32)      # zero in column L-1

    def conv3(v, w_ref, b):
        # v: (Cin, L) f32; w_ref: (3, Cout, Cin) bf16; b: (Cout, 1) f32
        vb = v.astype(jnp.bfloat16)
        y0 = jnp.dot(w_ref[0], vb, preferred_element_type=jnp.float32)
        y1 = jnp.dot(w_ref[1], vb, preferred_element_type=jnp.float32)
        y2 = jnp.dot(w_ref[2], vb, preferred_element_type=jnp.float32)
        # out[:, l] = y0[:, l-1] + y1[:, l] + y2[:, l+1]  (zero past the edges)
        out = (y1
               + pltpu.roll(y0, 1, axis=1) * lmask
               + pltpu.roll(y2, L - 1, axis=1) * rmask)
        return out + b

    def group_norm(h, gamma, beta):
        # h: (C, L) f32; gamma/beta: (C, 1) f32. Two-pass stats in f32.
        s = jnp.sum(h, axis=1, keepdims=True)                            # (C, 1)
        mean_g = jnp.dot(GmapT, s, preferred_element_type=jnp.float32) / n_per_group
        mean_c = jnp.dot(Gmap, mean_g, preferred_element_type=jnp.float32)
        d = h - mean_c
        ss = jnp.sum(d * d, axis=1, keepdims=True)                       # (C, 1)
        var_g = jnp.dot(GmapT, ss, preferred_element_type=jnp.float32) / n_per_group
        inv_g = jax.lax.rsqrt(var_g + eps)
        inv_c = jnp.dot(Gmap, inv_g, preferred_element_type=jnp.float32)
        scale = gamma * inv_c                                            # (C, 1)
        bias = beta - mean_c * scale                                     # (C, 1)
        return h * scale + bias                                          # 2 VPU ops/elem

    # conv_block1: conv(k=3, pad=1) -> GroupNorm -> SiLU
    h = conv3(x, w1_ref, b1_ref[...])
    h = group_norm(h, g1_ref[...], be1_ref[...])
    h = _silu(h)

    # time-embedding injection ('b c -> b c 1'): temb precomputed in wrapper.
    h = h + temb_ref[0]                              # (dim_out, 1) broadcast over L

    # conv_block2
    h = conv3(h, w2_ref, b2_ref[...])
    h = group_norm(h, g2_ref[...], be2_ref[...])
    h = _silu(h)

    # residual path: real 1x1 conv only when dim != dim_out, identity otherwise.
    if has_res_conv:
        res = jnp.dot(wr_ref[...], x.astype(jnp.bfloat16),
                      preferred_element_type=jnp.float32) + br_ref[...]
    else:
        res = x

    o_ref[...] = (h + res)[None]


# -------------------------------- wrapper ----------------------------------

def _vmem_capacity_bytes():
    try:
        return int(pltpu.get_tpu_info().vmem_capacity_bytes)
    except Exception:
        return 64 * 2**20  # conservative: v7x per-TensorCore VMEM


def _estimate_vmem_bytes(L, dim, dim_out, groups, has_res_conv):
    f32, bf16 = 4, 2
    n = 2 * dim * L * f32                           # x block (double-buffered)
    n += 2 * dim_out * f32                          # temb block
    n += 2 * dim_out * L * f32                      # out block
    n += 2 * 3 * (dim + dim_out) * dim_out * bf16   # w1, w2 tap matrices
    n += 2 * 6 * dim_out * f32                      # b / gamma / beta vectors
    n += 2 * 2 * groups * dim_out * f32             # Gmap, GmapT
    if has_res_conv:
        n += 2 * (dim * dim_out * bf16 + dim_out * f32)
    # live intermediates: bf16 copies of the conv inputs + ~6 (dim_out, L) f32 temps
    n += (dim + dim_out) * L * bf16 + 6 * dim_out * L * f32
    return n


def resnet_block(x_ncl, t, params, *, groups, eps=1e-5):
    """x_ncl: (B, dim, L) float32 (PyTorch NCL layout);  t: (B, time_emb_dim)."""
    B, dim, L = x_ncl.shape
    dim_out = params["w1"].shape[-1]
    assert dim_out % groups == 0
    has_res_conv = dim != dim_out

    x_ncl = x_ncl.astype(jnp.float32)

    # time MLP hoisted out of the kernel: one well-shaped (B,T)@(T,C) matmul.
    temb = jax.nn.silu(t.astype(jnp.float32)) @ params["wm"] + params["bm"]
    temb = temb.reshape(B, dim_out, 1)                              # (B, C, 1)

    # per-tap (Cout, Cin) conv matrices, pre-cast to bf16 for the MXU.
    w1k = jnp.transpose(params["w1"], (0, 2, 1)).astype(jnp.bfloat16)   # (3, dim_out, dim)
    w2k = jnp.transpose(params["w2"], (0, 2, 1)).astype(jnp.bfloat16)   # (3, dim_out, dim_out)

    # channel-major (C, 1) vectors for the (C, L) layout.
    def col(v):
        return v.reshape(dim_out, 1).astype(jnp.float32)

    b1c, g1c, be1c = col(params["b1"]), col(params["g1"]), col(params["be1"])
    b2c, g2c, be2c = col(params["b2"]), col(params["g2"]), col(params["be2"])

    # one-hot channel -> group map (and transpose) for GroupNorm statistics.
    ch = jnp.arange(dim_out) // (dim_out // groups)
    Gmap = jax.nn.one_hot(ch, groups, dtype=jnp.float32)            # (dim_out, groups)
    GmapT = Gmap.T                                                  # (groups, dim_out)

    kern = functools.partial(
        resnet_block_kernel,
        n_per_group=float(L * (dim_out // groups)),
        eps=eps, has_res_conv=has_res_conv)

    cap = _vmem_capacity_bytes()
    vmem_limit = int(min(0.8 * cap,
                         max(16 * 2**20,
                             4 * _estimate_vmem_bytes(L, dim, dim_out, groups,
                                                      has_res_conv))))

    def const(shape):
        return pl.BlockSpec(shape, lambda b: (0,) * len(shape))

    in_specs = [
        pl.BlockSpec((1, dim, L), lambda b: (b, 0, 0)),             # x (NCL, no transpose)
        pl.BlockSpec((1, dim_out, 1), lambda b: (b, 0, 0)),         # temb
        const((3, dim_out, dim)),                                   # w1 taps (bf16)
        const((dim_out, 1)),                                        # b1
        const((dim_out, 1)),                                        # gamma1
        const((dim_out, 1)),                                        # beta1
        const((3, dim_out, dim_out)),                               # w2 taps (bf16)
        const((dim_out, 1)),                                        # b2
        const((dim_out, 1)),                                        # gamma2
        const((dim_out, 1)),                                        # beta2
        const((dim_out, groups)),                                   # Gmap
        const((groups, dim_out)),                                   # GmapT
    ]
    args = [x_ncl, temb, w1k, b1c, g1c, be1c, w2k, b2c, g2c, be2c, Gmap, GmapT]
    if has_res_conv:
        in_specs += [const((dim_out, dim)),                         # wr (bf16)
                     const((dim_out, 1))]                           # br
        args += [params["wr"].T.astype(jnp.bfloat16),
                 params["br"].reshape(dim_out, 1).astype(jnp.float32)]

    grid_spec = pltpu.PrefetchScalarGridSpec(
        num_scalar_prefetch=0,
        grid=(B,),
        in_specs=in_specs,
        out_specs=pl.BlockSpec((1, dim_out, L), lambda b: (b, 0, 0)),
    )

    out_ncl = pl.pallas_call(
        kern,
        out_shape=jax.ShapeDtypeStruct((B, dim_out, L), jnp.float32),
        grid_spec=grid_spec,
        compiler_params=pltpu.CompilerParams(
            dimension_semantics=("parallel",),
            vmem_limit_bytes=vmem_limit),
    )(*args)

    return out_ncl                                                   # (B, dim_out, L)


# -------------------------- pure-JAX reference -----------------------------

def resnet_block_ref(x_ncl, t, p, *, groups, eps=1e-5):
    x = jnp.transpose(x_ncl, (0, 2, 1))                             # (B, L, dim)

    def conv3(v, w, b):
        L = v.shape[1]
        vp = jnp.pad(v, ((0, 0), (1, 1), (0, 0)))
        out = sum(jnp.einsum("bld,dc->blc", vp[:, k:k + L], w[k]) for k in range(3))
        return out + b

    def gn(h, gamma, beta):
        B, L, C = h.shape
        hg = h.reshape(B, L, groups, C // groups)
        mean = hg.mean(axis=(1, 3), keepdims=True)
        var = hg.var(axis=(1, 3), keepdims=True)
        hn = ((hg - mean) / jnp.sqrt(var + eps)).reshape(B, L, C)
        return hn * gamma + beta

    silu = jax.nn.silu
    h = silu(gn(conv3(x, p["w1"], p["b1"]), p["g1"], p["be1"]))
    temb = silu(t) @ p["wm"] + p["bm"]
    h = h + temb[:, None, :]
    h = silu(gn(conv3(h, p["w2"], p["b2"]), p["g2"], p["be2"]))
    if "wr" in p:
        res = jnp.einsum("bld,dc->blc", x, p["wr"]) + p["br"]
    else:
        res = x
    return jnp.transpose(h + res, (0, 2, 1))


# ---------------------------------- main ------------------------------------

if __name__ == "__main__":
    key = jax.random.PRNGKey(0)

    def rnd(k, shape, scale=0.1):
        return (scale * jax.random.normal(k, shape)).astype(jnp.float32)

    def make_params(k, dim, dim_out, T):
        ks = jax.random.split(k, 12)
        p = {
            # conv1: torch weight (dim_out, dim, 3) stored tap-major as (3, dim, dim_out)
            "w1": rnd(ks[0], (3, dim, dim_out)),
            "b1": rnd(ks[1], (1, dim_out)),
            "g1": 1.0 + rnd(ks[2], (1, dim_out)),
            "be1": rnd(ks[3], (1, dim_out)),
            # time mlp Linear(T -> dim_out)
            "wm": rnd(ks[4], (T, dim_out)),
            "bm": rnd(ks[5], (1, dim_out)),
            # conv2
            "w2": rnd(ks[6], (3, dim_out, dim_out)),
            "b2": rnd(ks[7], (1, dim_out)),
            "g2": 1.0 + rnd(ks[8], (1, dim_out)),
            "be2": rnd(ks[9], (1, dim_out)),
        }
        if dim != dim_out:  # residual 1x1 conv only when shapes differ
            p["wr"] = rnd(ks[10], (dim, dim_out))
            p["br"] = rnd(ks[11], (1, dim_out))
        return p

    B, L, T, groups = 2, 128, 32, 2
    # exercise both residual paths: real 1x1 conv (dim != dim_out) and identity
    for dim, dim_out in [(4, 8), (8, 8)]:
        kp, kx, kt, key = jax.random.split(key, 4)
        params = make_params(kp, dim, dim_out, T)
        x = jax.random.normal(kx, (B, dim, L), dtype=jnp.float32)   # NCL
        t = jax.random.normal(kt, (B, T), dtype=jnp.float32)

        out = jax.block_until_ready(resnet_block(x, t, params, groups=groups))
        ref = resnet_block_ref(x, t, params, groups=groups)

        assert out.shape == (B, dim_out, L)
        # bf16 MXU operands (f32 accumulation) -> slightly looser tolerance
        assert jnp.allclose(out, ref, atol=3e-2, rtol=3e-2), \
            f"mismatch vs JAX reference (dim={dim}, dim_out={dim_out})"

    print("KERNEL_OK")
</pallas_src>

<mosaic_0001>
module attributes {stable_mosaic.version = 11 : i64} {
  func.func @resnet_block_kernel(%arg0: i32, %arg1: memref<1x4x128xf32, #tpu.memory_space<vmem>>, %arg2: memref<1x8x1xf32, #tpu.memory_space<vmem>>, %arg3: memref<3x8x4xbf16, #tpu.memory_space<vmem>>, %arg4: memref<8x1xf32, #tpu.memory_space<vmem>>, %arg5: memref<8x1xf32, #tpu.memory_space<vmem>>, %arg6: memref<8x1xf32, #tpu.memory_space<vmem>>, %arg7: memref<3x8x8xbf16, #tpu.memory_space<vmem>>, %arg8: memref<8x1xf32, #tpu.memory_space<vmem>>, %arg9: memref<8x1xf32, #tpu.memory_space<vmem>>, %arg10: memref<8x1xf32, #tpu.memory_space<vmem>>, %arg11: memref<8x2xf32, #tpu.memory_space<vmem>>, %arg12: memref<2x8xf32, #tpu.memory_space<vmem>>, %arg13: memref<8x4xbf16, #tpu.memory_space<vmem>>, %arg14: memref<8x1xf32, #tpu.memory_space<vmem>>, %arg15: memref<1x8x128xf32, #tpu.memory_space<vmem>>) attributes {dimension_semantics = [#tpu.dimension_semantics<parallel>], iteration_bounds = array<i64: 2>, scalar_prefetch = 0 : i64, scratch_operands = 0 : i64, tpu.core_type = #tpu.core_type<tc>, window_params = [{transform_indices = @transform_0, window_bounds = array<i64: 1, 4, 128>}, {transform_indices = @transform_1, window_bounds = array<i64: 1, 8, 1>}, {pipeline_mode = #tpu.pipeline_mode<synchronous>, transform_indices = @transform_2, window_bounds = array<i64: 3, 8, 4>}, {pipeline_mode = #tpu.pipeline_mode<synchronous>, transform_indices = @transform_3, window_bounds = array<i64: 8, 1>}, {pipeline_mode = #tpu.pipeline_mode<synchronous>, transform_indices = @transform_4, window_bounds = array<i64: 8, 1>}, {pipeline_mode = #tpu.pipeline_mode<synchronous>, transform_indices = @transform_5, window_bounds = array<i64: 8, 1>}, {pipeline_mode = #tpu.pipeline_mode<synchronous>, transform_indices = @transform_6, window_bounds = array<i64: 3, 8, 8>}, {pipeline_mode = #tpu.pipeline_mode<synchronous>, transform_indices = @transform_7, window_bounds = array<i64: 8, 1>}, {pipeline_mode = #tpu.pipeline_mode<synchronous>, transform_indices = @transform_8, window_bounds = array<i64: 8, 1>}, {pipeline_mode = #tpu.pipeline_mode<synchronous>, transform_indices = @transform_9, window_bounds = array<i64: 8, 1>}, {pipeline_mode = #tpu.pipeline_mode<synchronous>, transform_indices = @transform_10, window_bounds = array<i64: 8, 2>}, {pipeline_mode = #tpu.pipeline_mode<synchronous>, transform_indices = @transform_11, window_bounds = array<i64: 2, 8>}, {pipeline_mode = #tpu.pipeline_mode<synchronous>, transform_indices = @transform_12, window_bounds = array<i64: 8, 4>}, {pipeline_mode = #tpu.pipeline_mode<synchronous>, transform_indices = @transform_13, window_bounds = array<i64: 8, 1>}, {transform_indices = @transform_14, window_bounds = array<i64: 1, 8, 128>}]} {
    %c0 = arith.constant 0 : index
    %c0_0 = arith.constant 0 : index
    %c0_1 = arith.constant 0 : index
    %0 = vector.load %arg1[%c0, %c0_0, %c0_1] : memref<1x4x128xf32, #tpu.memory_space<vmem>>, vector<1x4x128xf32>
    %1 = vector.shape_cast %0 : vector<1x4x128xf32> to vector<4x128xf32>
    %c0_2 = arith.constant 0 : index
    %c0_3 = arith.constant 0 : index
    %2 = vector.load %arg11[%c0_2, %c0_3] : memref<8x2xf32, #tpu.memory_space<vmem>>, vector<8x2xf32>
    %c0_4 = arith.constant 0 : index
    %c0_5 = arith.constant 0 : index
    %3 = vector.load %arg12[%c0_4, %c0_5] : memref<2x8xf32, #tpu.memory_space<vmem>>, vector<2x8xf32>
    %4 = tpu.iota {dimensions = array<i32: 1>} : vector<1x128xi32>
    %c0_i32 = arith.constant 0 : i32
    %5 = vector.broadcast %c0_i32 : i32 to vector<1x128xi32>
    %6 = arith.cmpi sgt, %4, %5 : vector<1x128xi32>
    %7 = arith.extui %6 : vector<1x128xi1> to vector<1x128xi32>
    %8 = arith.sitofp %7 : vector<1x128xi32> to vector<1x128xf32>
    %c127_i32 = arith.constant 127 : i32
    %9 = vector.broadcast %c127_i32 : i32 to vector<1x128xi32>
    %10 = arith.cmpi slt, %4, %9 : vector<1x128xi32>
    %11 = arith.extui %10 : vector<1x128xi1> to vector<1x128xi32>
    %12 = arith.sitofp %11 : vector<1x128xi32> to vector<1x128xf32>
    %c0_6 = arith.constant 0 : index
    %c0_7 = arith.constant 0 : index
    %13 = vector.load %arg4[%c0_6, %c0_7] : memref<8x1xf32, #tpu.memory_space<vmem>>, vector<8x1xf32>
    %14 = arith.truncf %1 : vector<4x128xf32> to vector<4x128xbf16>
    %c0_8 = arith.constant 0 : index
    %c0_9 = arith.constant 0 : index
    %c0_10 = arith.constant 0 : index
    %15 = vector.load %arg3[%c0_8, %c0_9, %c0_10] : memref<3x8x4xbf16, #tpu.memory_space<vmem>>, vector<1x8x4xbf16>
    %16 = vector.shape_cast %15 : vector<1x8x4xbf16> to vector<8x4xbf16>
    %cst = arith.constant dense<0.000000e+00> : vector<8x128xf32>
    %17 = tpu.matmul %16, %14, %cst {dimension_numbers = #tpu.dot_dimension_numbers<[1], [0], [0], [1], [0, 0, 1, 1], [], []>} : vector<8x4xbf16>, vector<4x128xbf16>, vector<8x128xf32> -> vector<8x128xf32>
    %c1 = arith.constant 1 : index
    %c0_11 = arith.constant 0 : index
    %c0_12 = arith.constant 0 : index
    %18 = vector.load %arg3[%c1, %c0_11, %c0_12] : memref<3x8x4xbf16, #tpu.memory_space<vmem>>, vector<1x8x4xbf16>
    %19 = vector.shape_cast %18 : vector<1x8x4xbf16> to vector<8x4xbf16>
    %cst_13 = arith.constant dense<0.000000e+00> : vector<8x128xf32>
    %20 = tpu.matmul %19, %14, %cst_13 {dimension_numbers = #tpu.dot_dimension_numbers<[1], [0], [0], [1], [0, 0, 1, 1], [], []>} : vector<8x4xbf16>, vector<4x128xbf16>, vector<8x128xf32> -> vector<8x128xf32>
    %c2 = arith.constant 2 : index
    %c0_14 = arith.constant 0 : index
    %c0_15 = arith.constant 0 : index
    %21 = vector.load %arg3[%c2, %c0_14, %c0_15] : memref<3x8x4xbf16, #tpu.memory_space<vmem>>, vector<1x8x4xbf16>
    %22 = vector.shape_cast %21 : vector<1x8x4xbf16> to vector<8x4xbf16>
    %cst_16 = arith.constant dense<0.000000e+00> : vector<8x128xf32>
    %23 = tpu.matmul %22, %14, %cst_16 {dimension_numbers = #tpu.dot_dimension_numbers<[1], [0], [0], [1], [0, 0, 1, 1], [], []>} : vector<8x4xbf16>, vector<4x128xbf16>, vector<8x128xf32> -> vector<8x128xf32>
    %c1_i32 = arith.constant 1 : i32
    %24 = tpu.dynamic_rotate %17 by %c1_i32 dim 1 : vector<8x128xf32>, i32 -> vector<8x128xf32>
    %25 = vector.broadcast %8 : vector<1x128xf32> to vector<8x128xf32>
    %26 = arith.mulf %24, %25 : vector<8x128xf32>
    %27 = arith.addf %20, %26 : vector<8x128xf32>
    %c127_i32_17 = arith.constant 127 : i32
    %28 = tpu.dynamic_rotate %23 by %c127_i32_17 dim 1 : vector<8x128xf32>, i32 -> vector<8x128xf32>
    %29 = vector.broadcast %12 : vector<1x128xf32> to vector<8x128xf32>
    %30 = arith.mulf %28, %29 : vector<8x128xf32>
    %31 = arith.addf %27, %30 : vector<8x128xf32>
    %32 = vector.broadcast %13 : vector<8x1xf32> to vector<8x128xf32>
    %33 = arith.addf %31, %32 : vector<8x128xf32>
    %c0_18 = arith.constant 0 : index
    %c0_19 = arith.constant 0 : index
    %34 = vector.load %arg5[%c0_18, %c0_19] : memref<8x1xf32, #tpu.memory_space<vmem>>, vector<8x1xf32>
    %c0_20 = arith.constant 0 : index
    %c0_21 = arith.constant 0 : index
    %35 = vector.load %arg6[%c0_20, %c0_21] : memref<8x1xf32, #tpu.memory_space<vmem>>, vector<8x1xf32>
    %cst_22 = arith.constant dense<0.000000e+00> : vector<8xf32>
    %36 = vector.multi_reduction <add>, %33, %cst_22 [1] : vector<8x128xf32> to vector<8xf32>
    %37 = vector.shape_cast %36 : vector<8xf32> to vector<8x1xf32>
    %cst_23 = arith.constant dense<0.000000e+00> : vector<2x1xf32>
    %38 = tpu.matmul %3, %37, %cst_23 {dimension_numbers = #tpu.dot_dimension_numbers<[1], [0], [0], [1], [0, 0, 1, 1], [], []>} : vector<2x8xf32>, vector<8x1xf32>, vector<2x1xf32> -> vector<2x1xf32>
    %cst_24 = arith.constant 5.120000e+02 : f32
    %39 = vector.broadcast %cst_24 : f32 to vector<2x1xf32>
    %40 = arith.divf %38, %39 : vector<2x1xf32>
    %cst_25 = arith.constant dense<0.000000e+00> : vector<8x1xf32>
    %41 = tpu.matmul %2, %40, %cst_25 {dimension_numbers = #tpu.dot_dimension_numbers<[1], [0], [0], [1], [0, 0, 1, 1], [], []>} : vector<8x2xf32>, vector<2x1xf32>, vector<8x1xf32> -> vector<8x1xf32>
    %42 = vector.broadcast %41 : vector<8x1xf32> to vector<8x128xf32>
    %43 = arith.subf %33, %42 : vector<8x128xf32>
    %44 = arith.mulf %43, %43 : vector<8x128xf32>
    %cst_26 = arith.constant dense<0.000000e+00> : vector<8xf32>
    %45 = vector.multi_reduction <add>, %44, %cst_26 [1] : vector<8x128xf32> to vector<8xf32>
    %46 = vector.shape_cast %45 : vector<8xf32> to vector<8x1xf32>
    %cst_27 = arith.constant dense<0.000000e+00> : vector<2x1xf32>
    %47 = tpu.matmul %3, %46, %cst_27 {dimension_numbers = #tpu.dot_dimension_numbers<[1], [0], [0], [1], [0, 0, 1, 1], [], []>} : vector<2x8xf32>, vector<8x1xf32>, vector<2x1xf32> -> vector<2x1xf32>
    %cst_28 = arith.constant 5.120000e+02 : f32
    %48 = vector.broadcast %cst_28 : f32 to vector<2x1xf32>
    %49 = arith.divf %47, %48 : vector<2x1xf32>
    %cst_29 = arith.constant 9.99999974E-6 : f32
    %50 = vector.broadcast %cst_29 : f32 to vector<2x1xf32>
    %51 = arith.addf %49, %50 : vector<2x1xf32>
    %52 = math.rsqrt %51 : vector<2x1xf32>
    %cst_30 = arith.constant dense<0.000000e+00> : vector<8x1xf32>
    %53 = tpu.matmul %2, %52, %cst_30 {dimension_numbers = #tpu.dot_dimension_numbers<[1], [0], [0], [1], [0, 0, 1, 1], [], []>} : vector<8x2xf32>, vector<2x1xf32>, vector<8x1xf32> -> vector<8x1xf32>
    %54 = arith.mulf %34, %53 : vector<8x1xf32>
    %55 = arith.mulf %41, %54 : vector<8x1xf32>
    %56 = arith.subf %35, %55 : vector<8x1xf32>
    %57 = vector.broadcast %54 : vector<8x1xf32> to vector<8x128xf32>
    %58 = arith.mulf %33, %57 : vector<8x128xf32>
    %59 = vector.broadcast %56 : vector<8x1xf32> to vector<8x128xf32>
    %60 = arith.addf %58, %59 : vector<8x128xf32>
    %61 = arith.negf %60 : vector<8x128xf32>
    %62 = math.exp %61 : vector<8x128xf32>
    %cst_31 = arith.constant 1.000000e+00 : f32
    %63 = vector.broadcast %cst_31 : f32 to vector<8x128xf32>
    %64 = arith.addf %63, %62 : vector<8x128xf32>
    %65 = arith.divf %63, %64 : vector<8x128xf32>
    %66 = arith.mulf %60, %65 : vector<8x128xf32>
    %c0_32 = arith.constant 0 : index
    %c0_33 = arith.constant 0 : index
    %c0_34 = arith.constant 0 : index
    %67 = vector.load %arg2[%c0_32, %c0_33, %c0_34] : memref<1x8x1xf32, #tpu.memory_space<vmem>>, vector<1x8x1xf32>
    %68 = vector.shape_cast %67 : vector<1x8x1xf32> to vector<8x1xf32>
    %69 = vector.broadcast %68 : vector<8x1xf32> to vector<8x128xf32>
    %70 = arith.addf %66, %69 : vector<8x128xf32>
    %c0_35 = arith.constant 0 : index
    %c0_36 = arith.constant 0 : index
    %71 = vector.load %arg8[%c0_35, %c0_36] : memref<8x1xf32, #tpu.memory_space<vmem>>, vector<8x1xf32>
    %72 = arith.truncf %70 : vector<8x128xf32> to vector<8x128xbf16>
    %c0_37 = arith.constant 0 : index
    %c0_38 = arith.constant 0 : index
    %c0_39 = arith.constant 0 : index
    %73 = vector.load %arg7[%c0_37, %c0_38, %c0_39] : memref<3x8x8xbf16, #tpu.memory_space<vmem>>, vector<1x8x8xbf16>
    %74 = vector.shape_cast %73 : vector<1x8x8xbf16> to vector<8x8xbf16>
    %cst_40 = arith.constant dense<0.000000e+00> : vector<8x128xf32>
    %75 = tpu.matmul %74, %72, %cst_40 {dimension_numbers = #tpu.dot_dimension_numbers<[1], [0], [0], [1], [0, 0, 1, 1], [], []>} : vector<8x8xbf16>, vector<8x128xbf16>, vector<8x128xf32> -> vector<8x128xf32>
    %c1_41 = arith.constant 1 : index
    %c0_42 = arith.constant 0 : index
    %c0_43 = arith.constant 0 : index
    %76 = vector.load %arg7[%c1_41, %c0_42, %c0_43] : memref<3x8x8xbf16, #tpu.memory_space<vmem>>, vector<1x8x8xbf16>
    %77 = vector.shape_cast %76 : vector<1x8x8xbf16> to vector<8x8xbf16>
    %cst_44 = arith.constant dense<0.000000e+00> : vector<8x128xf32>
    %78 = tpu.matmul %77, %72, %cst_44 {dimension_numbers = #tpu.dot_dimension_numbers<[1], [0], [0], [1], [0, 0, 1, 1], [], []>} : vector<8x8xbf16>, vector<8x128xbf16>, vector<8x128xf32> -> vector<8x128xf32>
    %c2_45 = arith.constant 2 : index
    %c0_46 = arith.constant 0 : index
    %c0_47 = arith.constant 0 : index
    %79 = vector.load %arg7[%c2_45, %c0_46, %c0_47] : memref<3x8x8xbf16, #tpu.memory_space<vmem>>, vector<1x8x8xbf16>
    %80 = vector.shape_cast %79 : vector<1x8x8xbf16> to vector<8x8xbf16>
    %cst_48 = arith.constant dense<0.000000e+00> : vector<8x128xf32>
    %81 = tpu.matmul %80, %72, %cst_48 {dimension_numbers = #tpu.dot_dimension_numbers<[1], [0], [0], [1], [0, 0, 1, 1], [], []>} : vector<8x8xbf16>, vector<8x128xbf16>, vector<8x128xf32> -> vector<8x128xf32>
    %c1_i32_49 = arith.constant 1 : i32
    %82 = tpu.dynamic_rotate %75 by %c1_i32_49 dim 1 : vector<8x128xf32>, i32 -> vector<8x128xf32>
    %83 = vector.broadcast %8 : vector<1x128xf32> to vector<8x128xf32>
    %84 = arith.mulf %82, %83 : vector<8x128xf32>
    %85 = arith.addf %78, %84 : vector<8x128xf32>
    %c127_i32_50 = arith.constant 127 : i32
    %86 = tpu.dynamic_rotate %81 by %c127_i32_50 dim 1 : vector<8x128xf32>, i32 -> vector<8x128xf32>
    %87 = vector.broadcast %12 : vector<1x128xf32> to vector<8x128xf32>
    %88 = arith.mulf %86, %87 : vector<8x128xf32>
    %89 = arith.addf %85, %88 : vector<8x128xf32>
    %90 = vector.broadcast %71 : vector<8x1xf32> to vector<8x128xf32>
    %91 = arith.addf %89, %90 : vector<8x128xf32>
    %c0_51 = arith.constant 0 : index
    %c0_52 = arith.constant 0 : index
    %92 = vector.load %arg9[%c0_51, %c0_52] : memref<8x1xf32, #tpu.memory_space<vmem>>, vector<8x1xf32>
    %c0_53 = arith.constant 0 : index
    %c0_54 = arith.constant 0 : index
    %93 = vector.load %arg10[%c0_53, %c0_54] : memref<8x1xf32, #tpu.memory_space<vmem>>, vector<8x1xf32>
    %cst_55 = arith.constant dense<0.000000e+00> : vector<8xf32>
    %94 = vector.multi_reduction <add>, %91, %cst_55 [1] : vector<8x128xf32> to vector<8xf32>
    %95 = vector.shape_cast %94 : vector<8xf32> to vector<8x1xf32>
    %cst_56 = arith.constant dense<0.000000e+00> : vector<2x1xf32>
    %96 = tpu.matmul %3, %95, %cst_56 {dimension_numbers = #tpu.dot_dimension_numbers<[1], [0], [0], [1], [0, 0, 1, 1], [], []>} : vector<2x8xf32>, vector<8x1xf32>, vector<2x1xf32> -> vector<2x1xf32>
    %cst_57 = arith.constant 5.120000e+02 : f32
    %97 = vector.broadcast %cst_57 : f32 to vector<2x1xf32>
    %98 = arith.divf %96, %97 : vector<2x1xf32>
    %cst_58 = arith.constant dense<0.000000e+00> : vector<8x1xf32>
    %99 = tpu.matmul %2, %98, %cst_58 {dimension_numbers = #tpu.dot_dimension_numbers<[1], [0], [0], [1], [0, 0, 1, 1], [], []>} : vector<8x2xf32>, vector<2x1xf32>, vector<8x1xf32> -> vector<8x1xf32>
    %100 = vector.broadcast %99 : vector<8x1xf32> to vector<8x128xf32>
    %101 = arith.subf %91, %100 : vector<8x128xf32>
    %102 = arith.mulf %101, %101 : vector<8x128xf32>
    %cst_59 = arith.constant dense<0.000000e+00> : vector<8xf32>
    %103 = vector.multi_reduction <add>, %102, %cst_59 [1] : vector<8x128xf32> to vector<8xf32>
    %104 = vector.shape_cast %103 : vector<8xf32> to vector<8x1xf32>
    %cst_60 = arith.constant dense<0.000000e+00> : vector<2x1xf32>
    %105 = tpu.matmul %3, %104, %cst_60 {dimension_numbers = #tpu.dot_dimension_numbers<[1], [0], [0], [1], [0, 0, 1, 1], [], []>} : vector<2x8xf32>, vector<8x1xf32>, vector<2x1xf32> -> vector<2x1xf32>
    %cst_61 = arith.constant 5.120000e+02 : f32
    %106 = vector.broadcast %cst_61 : f32 to vector<2x1xf32>
    %107 = arith.divf %105, %106 : vector<2x1xf32>
    %cst_62 = arith.constant 9.99999974E-6 : f32
    %108 = vector.broadcast %cst_62 : f32 to vector<2x1xf32>
    %109 = arith.addf %107, %108 : vector<2x1xf32>
    %110 = math.rsqrt %109 : vector<2x1xf32>
    %cst_63 = arith.constant dense<0.000000e+00> : vector<8x1xf32>
    %111 = tpu.matmul %2, %110, %cst_63 {dimension_numbers = #tpu.dot_dimension_numbers<[1], [0], [0], [1], [0, 0, 1, 1], [], []>} : vector<8x2xf32>, vector<2x1xf32>, vector<8x1xf32> -> vector<8x1xf32>
    %112 = arith.mulf %92, %111 : vector<8x1xf32>
    %113 = arith.mulf %99, %112 : vector<8x1xf32>
    %114 = arith.subf %93, %113 : vector<8x1xf32>
    %115 = vector.broadcast %112 : vector<8x1xf32> to vector<8x128xf32>
    %116 = arith.mulf %91, %115 : vector<8x128xf32>
    %117 = vector.broadcast %114 : vector<8x1xf32> to vector<8x128xf32>
    %118 = arith.addf %116, %117 : vector<8x128xf32>
    %119 = arith.negf %118 : vector<8x128xf32>
    %120 = math.exp %119 : vector<8x128xf32>
    %cst_64 = arith.constant 1.000000e+00 : f32
    %121 = vector.broadcast %cst_64 : f32 to vector<8x128xf32>
    %122 = arith.addf %121, %120 : vector<8x128xf32>
    %123 = arith.divf %121, %122 : vector<8x128xf32>
    %124 = arith.mulf %118, %123 : vector<8x128xf32>
    %c0_65 = arith.constant 0 : index
    %c0_66 = arith.constant 0 : index
    %125 = vector.load %arg13[%c0_65, %c0_66] : memref<8x4xbf16, #tpu.memory_space<vmem>>, vector<8x4xbf16>
    %126 = arith.truncf %1 : vector<4x128xf32> to vector<4x128xbf16>
    %cst_67 = arith.constant dense<0.000000e+00> : vector<8x128xf32>
    %127 = tpu.matmul %125, %126, %cst_67 {dimension_numbers = #tpu.dot_dimension_numbers<[1], [0], [0], [1], [0, 0, 1, 1], [], []>} : vector<8x4xbf16>, vector<4x128xbf16>, vector<8x128xf32> -> vector<8x128xf32>
    %c0_68 = arith.constant 0 : index
    %c0_69 = arith.constant 0 : index
    %128 = vector.load %arg14[%c0_68, %c0_69] : memref<8x1xf32, #tpu.memory_space<vmem>>, vector<8x1xf32>
    %129 = vector.broadcast %128 : vector<8x1xf32> to vector<8x128xf32>
    %130 = arith.addf %127, %129 : vector<8x128xf32>
    %131 = arith.addf %124, %130 : vector<8x128xf32>
    %132 = vector.shape_cast %131 : vector<8x128xf32> to vector<1x8x128xf32>
    %c0_70 = arith.constant 0 : index
    %c0_71 = arith.constant 0 : index
    %c0_72 = arith.constant 0 : index
    %133 = vector.load %arg15[%c0_70, %c0_71, %c0_72] : memref<1x8x128xf32, #tpu.memory_space<vmem>>, vector<1x8x128xf32>
    tpu.vector_store %arg15[%c0_70, %c0_71, %c0_72], %132 {strides = array<i32>} : memref<1x8x128xf32, #tpu.memory_space<vmem>>, vector<1x8x128xf32>,
    return
  }
  func.func @transform_0(%arg0: i32) -> (i32, i32, i32) {
    %c0_i32 = arith.constant 0 : i32
    %c0_i32_0 = arith.constant 0 : i32
    %c0_i32_1 = arith.constant 0 : i32
    return %arg0, %c0_i32, %c0_i32_0 : i32, i32, i32
  }
  func.func @transform_1(%arg0: i32) -> (i32, i32, i32) {
    %c0_i32 = arith.constant 0 : i32
    %c0_i32_0 = arith.constant 0 : i32
    %c0_i32_1 = arith.constant 0 : i32
    return %arg0, %c0_i32, %c0_i32_0 : i32, i32, i32
  }
  func.func @transform_2(%arg0: i32) -> (i32, i32, i32) {
    %c0_i32 = arith.constant 0 : i32
    %c0_i32_0 = arith.constant 0 : i32
    %c0_i32_1 = arith.constant 0 : i32
    %c0_i32_2 = arith.constant 0 : i32
    return %c0_i32, %c0_i32_0, %c0_i32_1 : i32, i32, i32
  }
  func.func @transform_3(%arg0: i32) -> (i32, i32) {
    %c0_i32 = arith.constant 0 : i32
    %c0_i32_0 = arith.constant 0 : i32
    %c0_i32_1 = arith.constant 0 : i32
    return %c0_i32, %c0_i32_0 : i32, i32
  }
  func.func @transform_4(%arg0: i32) -> (i32, i32) {
    %c0_i32 = arith.constant 0 : i32
    %c0_i32_0 = arith.constant 0 : i32
    %c0_i32_1 = arith.constant 0 : i32
    return %c0_i32, %c0_i32_0 : i32, i32
  }
  func.func @transform_5(%arg0: i32) -> (i32, i32) {
    %c0_i32 = arith.constant 0 : i32
    %c0_i32_0 = arith.constant 0 : i32
    %c0_i32_1 = arith.constant 0 : i32
    return %c0_i32, %c0_i32_0 : i32, i32
  }
  func.func @transform_6(%arg0: i32) -> (i32, i32, i32) {
    %c0_i32 = arith.constant 0 : i32
    %c0_i32_0 = arith.constant 0 : i32
    %c0_i32_1 = arith.constant 0 : i32
    %c0_i32_2 = arith.constant 0 : i32
    return %c0_i32, %c0_i32_0, %c0_i32_1 : i32, i32, i32
  }
  func.func @transform_7(%arg0: i32) -> (i32, i32) {
    %c0_i32 = arith.constant 0 : i32
    %c0_i32_0 = arith.constant 0 : i32
    %c0_i32_1 = arith.constant 0 : i32
    return %c0_i32, %c0_i32_0 : i32, i32
  }
  func.func @transform_8(%arg0: i32) -> (i32, i32) {
    %c0_i32 = arith.constant 0 : i32
    %c0_i32_0 = arith.constant 0 : i32
    %c0_i32_1 = arith.constant 0 : i32
    return %c0_i32, %c0_i32_0 : i32, i32
  }
  func.func @transform_9(%arg0: i32) -> (i32, i32) {
    %c0_i32 = arith.constant 0 : i32
    %c0_i32_0 = arith.constant 0 : i32
    %c0_i32_1 = arith.constant 0 : i32
    return %c0_i32, %c0_i32_0 : i32, i32
  }
  func.func @transform_10(%arg0: i32) -> (i32, i32) {
    %c0_i32 = arith.constant 0 : i32
    %c0_i32_0 = arith.constant 0 : i32
    %c0_i32_1 = arith.constant 0 : i32
    return %c0_i32, %c0_i32_0 : i32, i32
  }
  func.func @transform_11(%arg0: i32) -> (i32, i32) {
    %c0_i32 = arith.constant 0 : i32
    %c0_i32_0 = arith.constant 0 : i32
    %c0_i32_1 = arith.constant 0 : i32
    return %c0_i32, %c0_i32_0 : i32, i32
  }
  func.func @transform_12(%arg0: i32) -> (i32, i32) {
    %c0_i32 = arith.constant 0 : i32
    %c0_i32_0 = arith.constant 0 : i32
    %c0_i32_1 = arith.constant 0 : i32
    return %c0_i32, %c0_i32_0 : i32, i32
  }
  func.func @transform_13(%arg0: i32) -> (i32, i32) {
    %c0_i32 = arith.constant 0 : i32
    %c0_i32_0 = arith.constant 0 : i32
    %c0_i32_1 = arith.constant 0 : i32
    return %c0_i32, %c0_i32_0 : i32, i32
  }
  func.func @transform_14(%arg0: i32) -> (i32, i32, i32) {
    %c0_i32 = arith.constant 0 : i32
    %c0_i32_0 = arith.constant 0 : i32
    %c0_i32_1 = arith.constant 0 : i32
    return %arg0, %c0_i32, %c0_i32_0 : i32, i32, i32
  }
}

</mosaic_0001>

<llo_original>
// kernel: tpu_custom_call.1
$region0: #{tpu_custom_call.1}
  #allocation0 [shape = 'u32[]', space=smem, size = 0x4, offset = 0x4, fixed_abs, tag = 'smem constant byte address 0x4 - core index']
  #allocation1 [shape = 'u32[144,128]{1,0:T(1,128)}', space=vmem, size = 0x12000, scoped, tag = 'internal scratch']
  %s0 = inlined_call_operand.vmem [shape: f32[2,4,128], index: 0, kind: input, shape index: {}]
  %s1 = inlined_call_operand.vmem [shape: f32[2,8,1], index: 1, kind: input, shape index: {}]
  %s2 = inlined_call_operand.vmem [shape: bf16[3,8,4], index: 2, kind: input, shape index: {}]
  %s3 = inlined_call_operand.vmem [shape: f32[8,1], index: 3, kind: input, shape index: {}]
  %s4 = inlined_call_operand.vmem [shape: f32[8,1], index: 4, kind: input, shape index: {}]
  %s5 = inlined_call_operand.vmem [shape: f32[8,1], index: 5, kind: input, shape index: {}]
  %s6 = inlined_call_operand.vmem [shape: bf16[3,8,8], index: 6, kind: input, shape index: {}]
  %s7 = inlined_call_operand.vmem [shape: f32[8,1], index: 7, kind: input, shape index: {}]
  %s8 = inlined_call_operand.vmem [shape: f32[8,1], index: 8, kind: input, shape index: {}]
  %s9 = inlined_call_operand.vmem [shape: f32[8,1], index: 9, kind: input, shape index: {}]
  %s10 = inlined_call_operand.vmem [shape: f32[8,2], index: 10, kind: input, shape index: {}]
  %s11 = inlined_call_operand.vmem [shape: f32[2,8], index: 11, kind: input, shape index: {}]
  %s12 = inlined_call_operand.vmem [shape: bf16[8,4], index: 12, kind: input, shape index: {}]
  %s13 = inlined_call_operand.vmem [shape: f32[8,1], index: 13, kind: input, shape index: {}]
  %s14 = inlined_call_operand.hbm [shape: f32[2,8,128], index: 14, kind: output, shape index: {}]
  %s15 = sld [smem:[#allocation0]]
  $region89: #{tpu_custom_call.1} parent=0
    _
  %s17 = ssub.s32 1, %s15
  %s18 = scalar_select 0, %s17, %s15
  $region1: #{tpu_custom_call.1} parent=0
    #allocation2 [shape = 'u8[8192]{0}', space=vmem, size = 0x2000, scoped, tag = 'output window, operand 0']
    #allocation3 [shape = 's32[2]{0}', space=sflag, size = 0x8, scoped, tag = 'scoped memory for tpu_custom_call.1']
    %19 = vsyncpa [#allocation3], 0
    %s20 = scalar_lea.sflag [#allocation3], 1
    %21 = vsyncpa %s20, 0
    loop: start=0, step=1, limit=4
    $region2: #{tpu_custom_call.1} parent=1 // loop_pre_header
      _
    $region3: #{tpu_custom_call.1} parent=1 // loop_header
      %s23 = sphi 0, %s27
      %p24 = scmp.ge.s32.totalorder %s23, 4
      %s33 = sphi 0, %s35
      %s36 = sphi 0, %s33
      %s37 = sphi 0, %s36
      %s53 = sphi 0, %s37
      %s59 = sphi 0, %s61
      %s62 = sphi 0, %s59
      %s63 = sphi 0, %s62
      %s79 = sphi 0, %s63
      %s83 = sphi 0, %s83
      %s85 = sphi 0, %s83
      %s86 = sphi 0, %s85
      %s100 = sphi 0, %s86
      %s104 = sphi 0, %s104
      %s106 = sphi 0, %s104
      %s107 = sphi 0, %s106
      %s121 = sphi 0, %s107
      %s125 = sphi 0, %s125
      %s127 = sphi 0, %s125
      %s128 = sphi 0, %s127
      %s142 = sphi 0, %s128
      %s146 = sphi 0, %s146
      %s148 = sphi 0, %s146
      %s149 = sphi 0, %s148
      %s163 = sphi 0, %s149
      %s167 = sphi 0, %s167
      %s169 = sphi 0, %s167
      %s170 = sphi 0, %s169
      %s184 = sphi 0, %s170
      %s188 = sphi 0, %s188
      %s190 = sphi 0, %s188
      %s191 = sphi 0, %s190
      %s205 = sphi 0, %s191
      %s209 = sphi 0, %s209
      %s211 = sphi 0, %s209
      %s212 = sphi 0, %s211
      %s226 = sphi 0, %s212
      %s230 = sphi 0, %s230
      %s232 = sphi 0, %s230
      %s233 = sphi 0, %s232
      %s247 = sphi 0, %s233
      %s251 = sphi 0, %s251
      %s253 = sphi 0, %s251
      %s254 = sphi 0, %s253
      %s268 = sphi 0, %s254
      %s272 = sphi 0, %s272
      %s274 = sphi 0, %s272
      %s275 = sphi 0, %s274
      %s289 = sphi 0, %s275
      %s293 = sphi 0, %s293
      %s295 = sphi 0, %s293
      %s296 = sphi 0, %s295
      %s310 = sphi 0, %s296
      %s314 = sphi 0, %s314
      %s316 = sphi 0, %s314
      %s317 = sphi 0, %s316
      %s331 = sphi 0, %s317
      %s337 = sphi 0, %s339
      %s340 = sphi 0, %s337
      %s341 = sphi 0, %s340
      %s357 = sphi 0, %s341
    $region4: #{tpu_custom_call.1} parent=1 // loop_header_branch
      %26 = sbr.rel (%p24) target = $region8
    $region5: #{tpu_custom_call.1} parent=1 // loop_body
      %s28 = ssub.s32 %s23, 1
      %s29 = ssub.s32 %s23, 2
      %s30 = sadd.s32 %s23, 1
      %s31 = ssub.s32 %s23, %s30
      %p32 = scmp.eq.s32.totalorder %s31, 0
      %s34 = sadd.s32 %s33, 1
      %s35 = scalar_select %p32, %s33, %s34
      %p38 = pneg %p32
      %p39 = scmp.eq.s32.totalorder %s23, 1
      %p40 = por %p38, %p39
      %p41 = scmp.ne.s32.totalorder %s33, %s36
      %p42 = scmp.eq.s32.totalorder %s23, 0
      %p43 = por %p41, %p42
      %p44 = scmp.ne.s32.totalorder %s33, %s36
      %p45 = scmp.eq.s32.totalorder %s28, 1
      %p46 = por %p44, %p45
      %p47 = scmp.ne.s32.totalorder %s36, %s37
      %p48 = scmp.eq.s32.totalorder %s28, 0
      %p49 = por %p47, %p48
      %p50 = scmp.ne.s32.totalorder %s36, %s37
      %p51 = scmp.eq.s32.totalorder %s29, 1
      %p52 = por %p50, %p51
      %p54 = scmp.ne.s32.totalorder %s37, %s53
      %p55 = scmp.eq.s32.totalorder %s29, 0
      %p56 = por %p54, %p55
      %s57 = ssub.s32 %s23, %s30
      %p58 = scmp.eq.s32.totalorder %s57, 0
      %s60 = sadd.s32 %s59, 1
      %s61 = scalar_select %p58, %s59, %s60
      %p64 = pneg %p58
      %p65 = scmp.eq.s32.totalorder %s23, 1
      %p66 = por %p64, %p65
      %p67 = scmp.ne.s32.totalorder %s59, %s62
      %p68 = scmp.eq.s32.totalorder %s23, 0
      %p69 = por %p67, %p68
      %p70 = scmp.ne.s32.totalorder %s59, %s62
      %p71 = scmp.eq.s32.totalorder %s28, 1
      %p72 = por %p70, %p71
      %p73 = scmp.ne.s32.totalorder %s62, %s63
      %p74 = scmp.eq.s32.totalorder %s28, 0
      %p75 = por %p73, %p74
      %p76 = scmp.ne.s32.totalorder %s62, %s63
      %p77 = scmp.eq.s32.totalorder %s29, 1
      %p78 = por %p76, %p77
      %p80 = scmp.ne.s32.totalorder %s63, %s79
      %p81 = scmp.eq.s32.totalorder %s29, 0
      %p82 = por %p80, %p81
      %s84 = sadd.s32 %s83, 1
      %p87 = scmp.eq.s32.totalorder %s23, 1
      %p88 = scmp.ne.s32.totalorder %s83, %s85
      %p89 = scmp.eq.s32.totalorder %s23, 0
      %p90 = por %p88, %p89
      %p91 = scmp.ne.s32.totalorder %s83, %s85
      %p92 = scmp.eq.s32.totalorder %s28, 1
      %p93 = por %p91, %p92
      %p94 = scmp.ne.s32.totalorder %s85, %s86
      %p95 = scmp.eq.s32.totalorder %s28, 0
      %p96 = por %p94, %p95
      %p97 = scmp.ne.s32.totalorder %s85, %s86
      %p98 = scmp.eq.s32.totalorder %s29, 1
      %p99 = por %p97, %p98
      %p101 = scmp.ne.s32.totalorder %s86, %s100
      %p102 = scmp.eq.s32.totalorder %s29, 0
      %p103 = por %p101, %p102
      %s105 = sadd.s32 %s104, 1
      %p108 = scmp.eq.s32.totalorder %s23, 1
      %p109 = scmp.ne.s32.totalorder %s104, %s106
      %p110 = scmp.eq.s32.totalorder %s23, 0
      %p111 = por %p109, %p110
      %p112 = scmp.ne.s32.totalorder %s104, %s106
      %p113 = scmp.eq.s32.totalorder %s28, 1
      %p114 = por %p112, %p113
      %p115 = scmp.ne.s32.totalorder %s106, %s107
      %p116 = scmp.eq.s32.totalorder %s28, 0
      %p117 = por %p115, %p116
      %p118 = scmp.ne.s32.totalorder %s106, %s107
      %p119 = scmp.eq.s32.totalorder %s29, 1
      %p120 = por %p118, %p119
      %p122 = scmp.ne.s32.totalorder %s107, %s121
      %p123 = scmp.eq.s32.totalorder %s29, 0
      %p124 = por %p122, %p123
      %s126 = sadd.s32 %s125, 1
      %p129 = scmp.eq.s32.totalorder %s23, 1
      %p130 = scmp.ne.s32.totalorder %s125, %s127
      %p131 = scmp.eq.s32.totalorder %s23, 0
      %p132 = por %p130, %p131
      %p133 = scmp.ne.s32.totalorder %s125, %s127
      %p134 = scmp.eq.s32.totalorder %s28, 1
      %p135 = por %p133, %p134
      %p136 = scmp.ne.s32.totalorder %s127, %s128
      %p137 = scmp.eq.s32.totalorder %s28, 0
      %p138 = por %p136, %p137
      %p139 = scmp.ne.s32.totalorder %s127, %s128
      %p140 = scmp.eq.s32.totalorder %s29, 1
      %p141 = por %p139, %p140
      %p143 = scmp.ne.s32.totalorder %s128, %s142
      %p144 = scmp.eq.s32.totalorder %s29, 0
      %p145 = por %p143, %p144
      %s147 = sadd.s32 %s146, 1
      %p150 = scmp.eq.s32.totalorder %s23, 1
      %p151 = scmp.ne.s32.totalorder %s146, %s148
      %p152 = scmp.eq.s32.totalorder %s23, 0
      %p153 = por %p151, %p152
      %p154 = scmp.ne.s32.totalorder %s146, %s148
      %p155 = scmp.eq.s32.totalorder %s28, 1
      %p156 = por %p154, %p155
      %p157 = scmp.ne.s32.totalorder %s148, %s149
      %p158 = scmp.eq.s32.totalorder %s28, 0
      %p159 = por %p157, %p158
      %p160 = scmp.ne.s32.totalorder %s148, %s149
      %p161 = scmp.eq.s32.totalorder %s29, 1
      %p162 = por %p160, %p161
      %p164 = scmp.ne.s32.totalorder %s149, %s163
      %p165 = scmp.eq.s32.totalorder %s29, 0
      %p166 = por %p164, %p165
      %s168 = sadd.s32 %s167, 1
      %p171 = scmp.eq.s32.totalorder %s23, 1
      %p172 = scmp.ne.s32.totalorder %s167, %s169
      %p173 = scmp.eq.s32.totalorder %s23, 0
      %p174 = por %p172, %p173
      %p175 = scmp.ne.s32.totalorder %s167, %s169
      %p176 = scmp.eq.s32.totalorder %s28, 1
      %p177 = por %p175, %p176
      %p178 = scmp.ne.s32.totalorder %s169, %s170
      %p179 = scmp.eq.s32.totalorder %s28, 0
      %p180 = por %p178, %p179
      %p181 = scmp.ne.s32.totalorder %s169, %s170
      %p182 = scmp.eq.s32.totalorder %s29, 1
      %p183 = por %p181, %p182
      %p185 = scmp.ne.s32.totalorder %s170, %s184
      %p186 = scmp.eq.s32.totalorder %s29, 0
      %p187 = por %p185, %p186
      %s189 = sadd.s32 %s188, 1
      %p192 = scmp.eq.s32.totalorder %s23, 1
      %p193 = scmp.ne.s32.totalorder %s188, %s190
      %p194 = scmp.eq.s32.totalorder %s23, 0
      %p195 = por %p193, %p194
      %p196 = scmp.ne.s32.totalorder %s188, %s190
      %p197 = scmp.eq.s32.totalorder %s28, 1
      %p198 = por %p196, %p197
      %p199 = scmp.ne.s32.totalorder %s190, %s191
      %p200 = scmp.eq.s32.totalorder %s28, 0
      %p201 = por %p199, %p200
      %p202 = scmp.ne.s32.totalorder %s190, %s191
      %p203 = scmp.eq.s32.totalorder %s29, 1
      %p204 = por %p202, %p203
      %p206 = scmp.ne.s32.totalorder %s191, %s205
      %p207 = scmp.eq.s32.totalorder %s29, 0
      %p208 = por %p206, %p207
      %s210 = sadd.s32 %s209, 1
      %p213 = scmp.eq.s32.totalorder %s23, 1
      %p214 = scmp.ne.s32.totalorder %s209, %s211
      %p215 = scmp.eq.s32.totalorder %s23, 0
      %p216 = por %p214, %p215
      %p217 = scmp.ne.s32.totalorder %s209, %s211
      %p218 = scmp.eq.s32.totalorder %s28, 1
      %p219 = por %p217, %p218
      %p220 = scmp.ne.s32.totalorder %s211, %s212
      %p221 = scmp.eq.s32.totalorder %s28, 0
      %p222 = por %p220, %p221
      %p223 = scmp.ne.s32.totalorder %s211, %s212
      %p224 = scmp.eq.s32.totalorder %s29, 1
      %p225 = por %p223, %p224
      %p227 = scmp.ne.s32.totalorder %s212, %s226
      %p228 = scmp.eq.s32.totalorder %s29, 0
      %p229 = por %p227, %p228
      %s231 = sadd.s32 %s230, 1
      %p234 = scmp.eq.s32.totalorder %s23, 1
      %p235 = scmp.ne.s32.totalorder %s230, %s232
      %p236 = scmp.eq.s32.totalorder %s23, 0
      %p237 = por %p235, %p236
      %p238 = scmp.ne.s32.totalorder %s230, %s232
      %p239 = scmp.eq.s32.totalorder %s28, 1
      %p240 = por %p238, %p239
      %p241 = scmp.ne.s32.totalorder %s232, %s233
      %p242 = scmp.eq.s32.totalorder %s28, 0
      %p243 = por %p241, %p242
      %p244 = scmp.ne.s32.totalorder %s232, %s233
      %p245 = scmp.eq.s32.totalorder %s29, 1
      %p246 = por %p244, %p245
      %p248 = scmp.ne.s32.totalorder %s233, %s247
      %p249 = scmp.eq.s32.totalorder %s29, 0
      %p250 = por %p248, %p249
      %s252 = sadd.s32 %s251, 1
      %p255 = scmp.eq.s32.totalorder %s23, 1
      %p256 = scmp.ne.s32.totalorder %s251, %s253
      %p257 = scmp.eq.s32.totalorder %s23, 0
      %p258 = por %p256, %p257
      %p259 = scmp.ne.s32.totalorder %s251, %s253
      %p260 = scmp.eq.s32.totalorder %s28, 1
      %p261 = por %p259, %p260
      %p262 = scmp.ne.s32.totalorder %s253, %s254
      %p263 = scmp.eq.s32.totalorder %s28, 0
      %p264 = por %p262, %p263
      %p265 = scmp.ne.s32.totalorder %s253, %s254
      %p266 = scmp.eq.s32.totalorder %s29, 1
      %p267 = por %p265, %p266
      %p269 = scmp.ne.s32.totalorder %s254, %s268
      %p270 = scmp.eq.s32.totalorder %s29, 0
      %p271 = por %p269, %p270
      %s273 = sadd.s32 %s272, 1
      %p276 = scmp.eq.s32.totalorder %s23, 1
      %p277 = scmp.ne.s32.totalorder %s272, %s274
      %p278 = scmp.eq.s32.totalorder %s23, 0
      %p279 = por %p277, %p278
      %p280 = scmp.ne.s32.totalorder %s272, %s274
      %p281 = scmp.eq.s32.totalorder %s28, 1
      %p282 = por %p280, %p281
      %p283 = scmp.ne.s32.totalorder %s274, %s275
      %p284 = scmp.eq.s32.totalorder %s28, 0
      %p285 = por %p283, %p284
      %p286 = scmp.ne.s32.totalorder %s274, %s275
      %p287 = scmp.eq.s32.totalorder %s29, 1
      %p288 = por %p286, %p287
      %p290 = scmp.ne.s32.totalorder %s275, %s289
      %p291 = scmp.eq.s32.totalorder %s29, 0
      %p292 = por %p290, %p291
      %s294 = sadd.s32 %s293, 1
      %p297 = scmp.eq.s32.totalorder %s23, 1
      %p298 = scmp.ne.s32.totalorder %s293, %s295
      %p299 = scmp.eq.s32.totalorder %s23, 0
      %p300 = por %p298, %p299
      %p301 = scmp.ne.s32.totalorder %s293, %s295
      %p302 = scmp.eq.s32.totalorder %s28, 1
      %p303 = por %p301, %p302
      %p304 = scmp.ne.s32.totalorder %s295, %s296
      %p305 = scmp.eq.s32.totalorder %s28, 0
      %p306 = por %p304, %p305
      %p307 = scmp.ne.s32.totalorder %s295, %s296
      %p308 = scmp.eq.s32.totalorder %s29, 1
      %p309 = por %p307, %p308
      %p311 = scmp.ne.s32.totalorder %s296, %s310
      %p312 = scmp.eq.s32.totalorder %s29, 0
      %p313 = por %p311, %p312
      %s315 = sadd.s32 %s314, 1
      %p318 = scmp.eq.s32.totalorder %s23, 1
      %p319 = scmp.ne.s32.totalorder %s314, %s316
      %p320 = scmp.eq.s32.totalorder %s23, 0
      %p321 = por %p319, %p320
      %p322 = scmp.ne.s32.totalorder %s314, %s316
      %p323 = scmp.eq.s32.totalorder %s28, 1
      %p324 = por %p322, %p323
      %p325 = scmp.ne.s32.totalorder %s316, %s317
      %p326 = scmp.eq.s32.totalorder %s28, 0
      %p327 = por %p325, %p326
      %p328 = scmp.ne.s32.totalorder %s316, %s317
      %p329 = scmp.eq.s32.totalorder %s29, 1
      %p330 = por %p328, %p329
      %p332 = scmp.ne.s32.totalorder %s317, %s331
      %p333 = scmp.eq.s32.totalorder %s29, 0
      %p334 = por %p332, %p333
      %s335 = ssub.s32 %s23, %s30
      %p336 = scmp.eq.s32.totalorder %s335, 0
      %s338 = sadd.s32 %s337, 1
      %s339 = scalar_select %p336, %s337, %s338
      %p342 = pneg %p336
      %p343 = scmp.eq.s32.totalorder %s23, 1
      %p344 = por %p342, %p343
      %p345 = scmp.ne.s32.totalorder %s337, %s340
      %p346 = scmp.eq.s32.totalorder %s23, 0
      %p347 = por %p345, %p346
      %p348 = scmp.ne.s32.totalorder %s337, %s340
      %p349 = scmp.eq.s32.totalorder %s28, 1
      %p350 = por %p348, %p349
      %p351 = scmp.ne.s32.totalorder %s340, %s341
      %p352 = scmp.eq.s32.totalorder %s28, 0
      %p353 = por %p351, %p352
      %p354 = scmp.ne.s32.totalorder %s340, %s341
      %p355 = scmp.eq.s32.totalorder %s29, 1
      %p356 = por %p354, %p355
      %p358 = scmp.ne.s32.totalorder %s341, %s357
      %p359 = scmp.eq.s32.totalorder %s29, 0
      %p360 = por %p358, %p359
      %p361 = scmp.le.s32.totalorder 1, %s23
      %p362 = scmp.lt.s32.totalorder %s23, 3
      %p363 = pnand %p361, %p362
      %p364 = pneg %p363
      // Predicated region
      $region9: #{tpu_custom_call.1} parent=5 // pred_check
        _
      $region10: #{tpu_custom_call.1} parent=5 // pred_check_branch
        %366 = sbr.rel (%p363) target = $region12
      $region11: #{tpu_custom_call.1} parent=5 // pred_region
        %s367 = ssub.s32 %s23, 1
        // Predicated region
        $region13: #{tpu_custom_call.1} parent=11 // pred_check
          %p368 = pneg %p96
        $region14: #{tpu_custom_call.1} parent=11 // pred_check_branch
          %370 = sbr.rel (%p368) target = $region16
        $region15: #{tpu_custom_call.1} parent=11 // pred_region
          _
        $region16: #{tpu_custom_call.1} parent=11 // pred_fallthru
          _
        // Predicated region
        $region17: #{tpu_custom_call.1} parent=11 // pred_check
          %p371 = pneg %p117
        $region18: #{tpu_custom_call.1} parent=11 // pred_check_branch
          %373 = sbr.rel (%p371) target = $region20
        $region19: #{tpu_custom_call.1} parent=11 // pred_region
          _
        $region20: #{tpu_custom_call.1} parent=11 // pred_fallthru
          _
        // Predicated region
        $region21: #{tpu_custom_call.1} parent=11 // pred_check
          %p374 = pneg %p138
        $region22: #{tpu_custom_call.1} parent=11 // pred_check_branch
          %376 = sbr.rel (%p374) target = $region24
        $region23: #{tpu_custom_call.1} parent=11 // pred_region
          _
        $region24: #{tpu_custom_call.1} parent=11 // pred_fallthru
          _
        // Predicated region
        $region25: #{tpu_custom_call.1} parent=11 // pred_check
          %p377 = pneg %p159
        $region26: #{tpu_custom_call.1} parent=11 // pred_check_branch
          %379 = sbr.rel (%p377) target = $region28
        $region27: #{tpu_custom_call.1} parent=11 // pred_region
          _
        $region28: #{tpu_custom_call.1} parent=11 // pred_fallthru
          _
        // Predicated region
        $region29: #{tpu_custom_call.1} parent=11 // pred_check
          %p380 = pneg %p180
        $region30: #{tpu_custom_call.1} parent=11 // pred_check_branch
          %382 = sbr.rel (%p380) target = $region32
        $region31: #{tpu_custom_call.1} parent=11 // pred_region
          _
        $region32: #{tpu_custom_call.1} parent=11 // pred_fallthru
          _
        // Predicated region
        $region33: #{tpu_custom_call.1} parent=11 // pred_check
          %p383 = pneg %p201
        $region34: #{tpu_custom_call.1} parent=11 // pred_check_branch
          %385 = sbr.rel (%p383) target = $region36
        $region35: #{tpu_custom_call.1} parent=11 // pred_region
          _
        $region36: #{tpu_custom_call.1} parent=11 // pred_fallthru
          _
        // Predicated region
        $region37: #{tpu_custom_call.1} parent=11 // pred_check
          %p386 = pneg %p222
        $region38: #{tpu_custom_call.1} parent=11 // pred_check_branch
          %388 = sbr.rel (%p386) target = $region40
        $region39: #{tpu_custom_call.1} parent=11 // pred_region
          _
        $region40: #{tpu_custom_call.1} parent=11 // pred_fallthru
          _
        // Predicated region
        $region41: #{tpu_custom_call.1} parent=11 // pred_check
          %p389 = pneg %p243
        $region42: #{tpu_custom_call.1} parent=11 // pred_check_branch
          %391 = sbr.rel (%p389) target = $region44
        $region43: #{tpu_custom_call.1} parent=11 // pred_region
          _
        $region44: #{tpu_custom_call.1} parent=11 // pred_fallthru
          _
        // Predicated region
        $region45: #{tpu_custom_call.1} parent=11 // pred_check
          %p392 = pneg %p264
        $region46: #{tpu_custom_call.1} parent=11 // pred_check_branch
          %394 = sbr.rel (%p392) target = $region48
        $region47: #{tpu_custom_call.1} parent=11 // pred_region
          _
        $region48: #{tpu_custom_call.1} parent=11 // pred_fallthru
          _
        // Predicated region
        $region49: #{tpu_custom_call.1} parent=11 // pred_check
          %p395 = pneg %p285
        $region50: #{tpu_custom_call.1} parent=11 // pred_check_branch
          %397 = sbr.rel (%p395) target = $region52
        $region51: #{tpu_custom_call.1} parent=11 // pred_region
          _
        $region52: #{tpu_custom_call.1} parent=11 // pred_fallthru
          _
        // Predicated region
        $region53: #{tpu_custom_call.1} parent=11 // pred_check
          %p398 = pneg %p306
        $region54: #{tpu_custom_call.1} parent=11 // pred_check_branch
          %400 = sbr.rel (%p398) target = $region56
        $region55: #{tpu_custom_call.1} parent=11 // pred_region
          _
        $region56: #{tpu_custom_call.1} parent=11 // pred_fallthru
          _
        // Predicated region
        $region57: #{tpu_custom_call.1} parent=11 // pred_check
          %p401 = pneg %p327
        $region58: #{tpu_custom_call.1} parent=11 // pred_check_branch
          %403 = sbr.rel (%p401) target = $region60
        $region59: #{tpu_custom_call.1} parent=11 // pred_region
          _
        $region60: #{tpu_custom_call.1} parent=11 // pred_fallthru
          _
      $region12: #{tpu_custom_call.1} parent=5 // pred_fallthru
        _
      %p404 = scmp.lt.s32.totalorder %s23, 2
      // Predicated region
      $region61: #{tpu_custom_call.1} parent=5 // pred_check
        %p405 = pneg %p404
      $region62: #{tpu_custom_call.1} parent=5 // pred_check_branch
        %407 = sbr.rel (%p405) target = $region64
      $region63: #{tpu_custom_call.1} parent=5 // pred_region
        // Predicated region
        $region65: #{tpu_custom_call.1} parent=63 // pred_check
          %p408 = pneg %p43
        $region66: #{tpu_custom_call.1} parent=63 // pred_check_branch
          %410 = sbr.rel (%p408) target = $region68
        $region67: #{tpu_custom_call.1} parent=63 // pred_region
          %p411 = scmp.lt.s32.totalorder %s23, 1
          %s412 = scalar_select %p411, %s23, 1
          %s413 = smul.addr %s412, 4
          %s414 = scalar_lea.vmem %s0, %s413
        $region68: #{tpu_custom_call.1} parent=63 // pred_fallthru
          _
        // Predicated region
        $region69: #{tpu_custom_call.1} parent=63 // pred_check
          %p415 = pneg %p69
        $region70: #{tpu_custom_call.1} parent=63 // pred_check_branch
          %417 = sbr.rel (%p415) target = $region72
        $region71: #{tpu_custom_call.1} parent=63 // pred_region
          %p418 = scmp.lt.s32.totalorder %s23, 1
          %s419 = scalar_select %p418, %s23, 1
          %s420 = smul.addr %s419, 8
          %s421 = scalar_lea.vmem %s1, %s420
        $region72: #{tpu_custom_call.1} parent=63 // pred_fallthru
          _
      $region64: #{tpu_custom_call.1} parent=5 // pred_fallthru
        _
      %p422 = scmp.le.s32.totalorder 1, %s23
      %p423 = scmp.lt.s32.totalorder %s23, 3
      %p424 = pnand %p422, %p423
      %p425 = pneg %p424
      // Predicated region
      $region73: #{tpu_custom_call.1} parent=5 // pred_check
        _
      $region74: #{tpu_custom_call.1} parent=5 // pred_check_branch
        %427 = sbr.rel (%p424) target = $region76
      $region75: #{tpu_custom_call.1} parent=5 // pred_region
        %s428 = ssub.s32 %s23, 1
        %p429 = scmp.lt.s32.totalorder %s28, 1
        %s430 = scalar_select %p429, %s28, 1
        %s431 = smul.addr %s430, 4
        %s432 = scalar_lea.vmem %s0, %s431
        %p433 = pneg %p49
        %p434 = pneg %p46
        %p435 = scmp.lt.s32.totalorder %s28, 1
        %s436 = scalar_select %p435, %s28, 1
        %s437 = smul.addr %s436, 8
        %s438 = scalar_lea.vmem %s1, %s437
        %p439 = pneg %p75
        %p440 = pneg %p72
        %p441 = pneg %p96
        %p442 = pneg %p93
        %p443 = pneg %p117
        %p444 = pneg %p114
        %p445 = pneg %p138
        %p446 = pneg %p135
        %p447 = pneg %p159
        %p448 = pneg %p156
        %p449 = pneg %p180
        %p450 = pneg %p177
        %p451 = pneg %p201
        %p452 = pneg %p198
        %p453 = pneg %p222
        %p454 = pneg %p219
        %p455 = pneg %p243
        %p456 = pneg %p240
        %p457 = pneg %p264
        %p458 = pneg %p261
        %p459 = pneg %p285
        %p460 = pneg %p282
        %p461 = pneg %p306
        %p462 = pneg %p303
        %p463 = pneg %p327
        %p464 = pneg %p324
        %p465 = pneg %p353
        %p466 = pneg %p350
        %s467 = sand.u32 %s340, 1
        %s468 = scalar_lea.sflag [#allocation3], %s467
        %s469 = sand.u32 %s340, 1
        %s470 = smul.addr %s469, 8
        %s471 = scalar_lea.vmem [#allocation2], %s470
        %p472 = scmp.lt.s32.totalorder %s28, 1
        %s473 = scalar_select %p472, %s28, 1
        %s474 = smul.addr %s473, 4
        %s475 = scalar_lea.vmem %s0, %s474
        %p476 = scmp.lt.s32.totalorder %s28, 1
        %s477 = scalar_select %p476, %s28, 1
        %s478 = smul.addr %s477, 8
        %s479 = scalar_lea.vmem %s1, %s478
        %v481 = vld [vmem:[%s475] sm:$0xf]
        %v482 = vld [vmem:[%s10] sm:$0xff]
        %v483 = vld [vmem:[%s11] sm:$0x3]
        %v484 = vlaneseq
        %v485 = vand.u32 %v484, 127
        %vm486 = vcmp.gt.s32.totalorder %v485, 0
        %v487 = vsel %vm486, 1, 0
        %v488 = vcvt.s32.f32 %v487
        %vm489 = vcmp.lt.s32.totalorder %v485, 127
        %v490 = vsel %vm489, 1, 0
        %v491 = vcvt.s32.f32 %v490
        %v492 = vld [vmem:[%s3] sm:$0xff]
        %v493 = vpack.c.bf16 %v481, %v481
        %v494 = vld [vmem:[%s2] sm:$0xf]
        %vm495 = vcmask 31744
        %v497 = vsel %vm495, %v494, 0
        %vm499 = vcmask 1041408
        %v501 = vsel %vm499, %v493, 0
        %503 = vmatprep.subr.bf16.mxu0 0
        %504 = vmatpush1.bf16.msra.mxu0 0
        %505 = vmatprep.subr.bf16.mxu0 0
        %506 = vmatpush1.bf16.msra.mxu0 0
        %507 = vmatprep.subr.bf16.mxu0 0
        %508 = vmatpush1.bf16.msra.mxu0 0
        %509 = vmatprep.subr.bf16.mxu0 0
        %510 = vmatpush1.bf16.msra.mxu0 0
        %511 = vmatprep.subr.bf16.mxu0 0
        %512 = vmatpush1.bf16.msra.mxu0 0
        %513 = vmatprep.subr.bf16.mxu0 0
        %514 = vmatpush1.bf16.msra.mxu0 0
        %515 = vmatprep.subr.bf16.mxu0 0
        %516 = vmatpush1.bf16.msra.mxu0 0
        %517 = vmatprep.subr.bf16.mxu0 0
        %518 = vmatpush1.bf16.msra.mxu0 %v501
        %519 = vmatprep.subr.bf16.mxu0 0
        %520 = vmatpush2.bf16.msra.mxu0 0
        %521 = vmatprep.subr.bf16.mxu0 0
        %522 = vmatpush2.bf16.msra.mxu0 0
        %523 = vmatprep.subr.bf16.mxu0 0
        %524 = vmatpush2.bf16.msra.mxu0 0
        %525 = vmatprep.subr.bf16.mxu0 0
        %526 = vmatpush2.bf16.msra.mxu0 0
        %527 = vmatprep.subr.bf16.mxu0 0
        %528 = vmatpush2.bf16.msra.mxu0 0
        %529 = vmatprep.subr.bf16.mxu0 0
        %530 = vmatpush2.bf16.msra.mxu0 0
        %531 = vmatprep.subr.bf16.mxu0 0
        %532 = vmatpush2.bf16.msra.mxu0 0
        %533 = vmatprep.subr.bf16.mxu0 0
        %534 = vmatpush2.bf16.msra.mxu0 0
        %535 = vmatprep.mubr.bf16.mxu0 0
        %536 = vmatmul.mubr.bf16.gmra.mxu0 %v497
        %v537 = vpop.f32.mrf.mxu0
        %v538 = vadd.f32 0.0, %v537
        %v539 = vpop.f32.mrf.mxu0
        %v540 = vpop.f32.mrf.mxu0
        %v541 = vpop.f32.mrf.mxu0
        %542 = vdwg.mxu0
        %s543 = scalar_lea.vmem %s2, 4
        %v544 = vld [vmem:[%s543] sm:$0xf]
        %s545 = scalar_lea.vmem %s2, 8
        %v546 = vld [vmem:[%s545] sm:$0xf]
        %v548 = vsel %vm495, %v546, 0
        %550 = vmatprep.subr.bf16.mxu0 0
        %551 = vmatpush1.bf16.msra.mxu0 0
        %552 = vmatprep.subr.bf16.mxu0 0
        %553 = vmatpush1.bf16.msra.mxu0 0
        %554 = vmatprep.subr.bf16.mxu0 0
        %555 = vmatpush1.bf16.msra.mxu0 0
        %556 = vmatprep.subr.bf16.mxu0 0
        %557 = vmatpush1.bf16.msra.mxu0 0
        %558 = vmatprep.subr.bf16.mxu0 0
        %559 = vmatpush1.bf16.msra.mxu0 0
        %560 = vmatprep.subr.bf16.mxu0 0
        %561 = vmatpush1.bf16.msra.mxu0 0
        %562 = vmatprep.subr.bf16.mxu0 0
        %563 = vmatpush1.bf16.msra.mxu0 0
        %564 = vmatprep.subr.bf16.mxu0 0
        %565 = vmatpush1.bf16.msra.mxu0 %v501
        %566 = vmatprep.subr.bf16.mxu0 0
        %567 = vmatpush2.bf16.msra.mxu0 0
        %568 = vmatprep.subr.bf16.mxu0 0
        %569 = vmatpush2.bf16.msra.mxu0 0
        %570 = vmatprep.subr.bf16.mxu0 0
        %571 = vmatpush2.bf16.msra.mxu0 0
        %572 = vmatprep.subr.bf16.mxu0 0
        %573 = vmatpush2.bf16.msra.mxu0 0
        %574 = vmatprep.subr.bf16.mxu0 0
        %575 = vmatpush2.bf16.msra.mxu0 0
        %576 = vmatprep.subr.bf16.mxu0 0
        %577 = vmatpush2.bf16.msra.mxu0 0
        %578 = vmatprep.subr.bf16.mxu0 0
        %579 = vmatpush2.bf16.msra.mxu0 0
        %580 = vmatprep.subr.bf16.mxu0 0
        %581 = vmatpush2.bf16.msra.mxu0 0
        %582 = vmatprep.mubr.bf16.mxu0 0
        %583 = vmatmul.mubr.bf16.gmra.mxu0 %v548
        %v584 = vpop.f32.mrf.mxu0
        %v585 = vadd.f32 0.0, %v584
        %v586 = vpop.f32.mrf.mxu0
        %v587 = vpop.f32.mrf.mxu0
        %v588 = vpop.f32.mrf.mxu0
        %589 = vdwg.mxu0
        %590 = vrot.lane.b32.xlu0 %v538, 1
        %v591 = vpop.permute.xlu0 %590
        %v592 = vmul.f32 %v591, %v488
        %v594 = vsel %vm495, %v544, 0
        %596 = vmatprep.subr.bf16.mxu0 0
        %597 = vmatpush1.bf16.msra.mxu0 0
        %598 = vmatprep.subr.bf16.mxu0 0
        %599 = vmatpush1.bf16.msra.mxu0 0
        %600 = vmatprep.subr.bf16.mxu0 0
        %601 = vmatpush1.bf16.msra.mxu0 0
        %602 = vmatprep.subr.bf16.mxu0 0
        %603 = vmatpush1.bf16.msra.mxu0 0
        %604 = vmatprep.subr.bf16.mxu0 0
        %605 = vmatpush1.bf16.msra.mxu0 0
        %606 = vmatprep.subr.bf16.mxu0 0
        %607 = vmatpush1.bf16.msra.mxu0 0
        %608 = vmatprep.subr.bf16.mxu0 0
        %609 = vmatpush1.bf16.msra.mxu0 0
        %610 = vmatprep.subr.bf16.mxu0 0
        %611 = vmatpush1.bf16.msra.mxu0 %v501
        %612 = vmatprep.subr.bf16.mxu0 0
        %613 = vmatpush2.bf16.msra.mxu0 0
        %614 = vmatprep.subr.bf16.mxu0 0
        %615 = vmatpush2.bf16.msra.mxu0 0
        %616 = vmatprep.subr.bf16.mxu0 0
        %617 = vmatpush2.bf16.msra.mxu0 0
        %618 = vmatprep.subr.bf16.mxu0 0
        %619 = vmatpush2.bf16.msra.mxu0 0
        %620 = vmatprep.subr.bf16.mxu0 0
        %621 = vmatpush2.bf16.msra.mxu0 0
        %622 = vmatprep.subr.bf16.mxu0 0
        %623 = vmatpush2.bf16.msra.mxu0 0
        %624 = vmatprep.subr.bf16.mxu0 0
        %625 = vmatpush2.bf16.msra.mxu0 0
        %626 = vmatprep.subr.bf16.mxu0 0
        %627 = vmatpush2.bf16.msra.mxu0 0
        %628 = vmatprep.mubr.bf16.mxu0 0
        %629 = vmatmul.mubr.bf16.gmra.mxu0 %v594
        %v630 = vpop.f32.mrf.mxu0
        %v631 = vadd.f32 %v592, %v630
        %v632 = vpop.f32.mrf.mxu0
        %v633 = vpop.f32.mrf.mxu0
        %v634 = vpop.f32.mrf.mxu0
        %635 = vdwg.mxu0
        %636 = vrot.lane.b32.xlu0 %v585, 127
        %v637 = vpop.permute.xlu0 %636
        %v638 = vmul.f32 %v637, %v491
        %v639 = vadd.f32 %v631, %v638
        %641 = vset.pattern.permute.xlu0 0
        %642 = vperm.xlu0 %641, %v492
        %v643 = vpop.permute.xlu0 %642
        %v645 = vadd.f32 %v639, %v643
        %v646 = vld [vmem:[%s4] sm:$0xff]
        %v647 = vld [vmem:[%s5] sm:$0xff]
        %648 = vadd.xlane.f32.xlu0 %v645
        %v649 = vpop.xlane.xlu0 %648
        %vm650 = vcmask 64512
        %v652 = vsel %vm650, %v483, 0
        %654 = vmatprep.subr.mxu0 0.0
        %655 = vmatpush1.msra.mxu0 0.0
        %656 = vmatprep.subr.mxu0 0.0
        %657 = vmatpush1.msra.mxu0 0.0
        %658 = vmatprep.subr.mxu0 0.0
        %659 = vmatpush1.msra.mxu0 0.0
        %660 = vmatprep.subr.mxu0 0.0
        %661 = vmatpush1.msra.mxu0 0.0
        %662 = vmatprep.subr.mxu0 0.0
        %663 = vmatpush1.msra.mxu0 0.0
        %664 = vmatprep.subr.mxu0 0.0
        %665 = vmatpush1.msra.mxu0 0.0
        %666 = vmatprep.subr.mxu0 0.0
        %667 = vmatpush1.msra.mxu0 0.0
        %668 = vmatprep.subr.mxu0 0.0
        %669 = vmatpush1.msra.mxu0 0.0
        %670 = vmatprep.subr.mxu0 0.0
        %671 = vmatpush1.msra.mxu0 0.0
        %672 = vmatprep.subr.mxu0 0.0
        %673 = vmatpush1.msra.mxu0 0.0
        %674 = vmatprep.subr.mxu0 0.0
        %675 = vmatpush1.msra.mxu0 0.0
        %676 = vmatprep.subr.mxu0 0.0
        %677 = vmatpush1.msra.mxu0 0.0
        %678 = vmatprep.subr.mxu0 0.0
        %679 = vmatpush1.msra.mxu0 0.0
        %680 = vmatprep.subr.mxu0 0.0
        %681 = vmatpush1.msra.mxu0 0.0
        %682 = vmatprep.subr.mxu0 0.0
        %683 = vmatpush1.msra.mxu0 0.0
        %684 = vmatprep.subr.mxu0 0.0
        %685 = vmatpush1.msra.mxu0 %v649
        %686 = vmatprep.subr.mxu0 0.0
        %687 = vmatpush2.msra.mxu0 0.0
        %688 = vmatprep.subr.mxu0 0.0
        %689 = vmatpush2.msra.mxu0 0.0
        %690 = vmatprep.subr.mxu0 0.0
        %691 = vmatpush2.msra.mxu0 0.0
        %692 = vmatprep.subr.mxu0 0.0
        %693 = vmatpush2.msra.mxu0 0.0
        %694 = vmatprep.subr.mxu0 0.0
        %695 = vmatpush2.msra.mxu0 0.0
        %696 = vmatprep.subr.mxu0 0.0
        %697 = vmatpush2.msra.mxu0 0.0
        %698 = vmatprep.subr.mxu0 0.0
        %699 = vmatpush2.msra.mxu0 0.0
        %700 = vmatprep.subr.mxu0 0.0
        %701 = vmatpush2.msra.mxu0 0.0
        %702 = vmatprep.subr.mxu0 0.0
        %703 = vmatpush2.msra.mxu0 0.0
        %704 = vmatprep.subr.mxu0 0.0
        %705 = vmatpush2.msra.mxu0 0.0
        %706 = vmatprep.subr.mxu0 0.0
        %707 = vmatpush2.msra.mxu0 0.0
        %708 = vmatprep.subr.mxu0 0.0
        %709 = vmatpush2.msra.mxu0 0.0
        %710 = vmatprep.subr.mxu0 0.0
        %711 = vmatpush2.msra.mxu0 0.0
        %712 = vmatprep.subr.mxu0 0.0
        %713 = vmatpush2.msra.mxu0 0.0
        %714 = vmatprep.subr.mxu0 0.0
        %715 = vmatpush2.msra.mxu0 0.0
        %716 = vmatprep.subr.mxu0 0.0
        %717 = vmatpush2.msra.mxu0 0.0
        %718 = vmatprep.mubr.f32.mxu0 0.0
        %719 = vmatmul.mubr.f32.gmra.mxu0 %v652
        %v720 = vpop.f32.mrf.mxu0
        %v721 = vadd.f32 0.0, %v720
        %v722 = vpop.f32.mrf.mxu0
        %723 = vdwg.mxu0
        %v724 = vrcp.pop 512.0
        %v725 = vmul.f32 %v721, %v724
        %vm726 = vcmask 15360
        %v728 = vsel %vm726, %v482, 0
        %v731 = vsel %vm499, %v725, 0
        %733 = vmatprep.subr.mxu0 0.0
        %734 = vmatpush1.msra.mxu0 0.0
        %735 = vmatprep.subr.mxu0 0.0
        %736 = vmatpush1.msra.mxu0 0.0
        %737 = vmatprep.subr.mxu0 0.0
        %738 = vmatpush1.msra.mxu0 0.0
        %739 = vmatprep.subr.mxu0 0.0
        %740 = vmatpush1.msra.mxu0 0.0
        %741 = vmatprep.subr.mxu0 0.0
        %742 = vmatpush1.msra.mxu0 0.0
        %743 = vmatprep.subr.mxu0 0.0
        %744 = vmatpush1.msra.mxu0 0.0
        %745 = vmatprep.subr.mxu0 0.0
        %746 = vmatpush1.msra.mxu0 0.0
        %747 = vmatprep.subr.mxu0 0.0
        %748 = vmatpush1.msra.mxu0 0.0
        %749 = vmatprep.subr.mxu0 0.0
        %750 = vmatpush1.msra.mxu0 0.0
        %751 = vmatprep.subr.mxu0 0.0
        %752 = vmatpush1.msra.mxu0 0.0
        %753 = vmatprep.subr.mxu0 0.0
        %754 = vmatpush1.msra.mxu0 0.0
        %755 = vmatprep.subr.mxu0 0.0
        %756 = vmatpush1.msra.mxu0 0.0
        %757 = vmatprep.subr.mxu0 0.0
        %758 = vmatpush1.msra.mxu0 0.0
        %759 = vmatprep.subr.mxu0 0.0
        %760 = vmatpush1.msra.mxu0 0.0
        %761 = vmatprep.subr.mxu0 0.0
        %762 = vmatpush1.msra.mxu0 0.0
        %763 = vmatprep.subr.mxu0 0.0
        %764 = vmatpush1.msra.mxu0 %v731
        %765 = vmatprep.subr.mxu0 0.0
        %766 = vmatpush2.msra.mxu0 0.0
        %767 = vmatprep.subr.mxu0 0.0
        %768 = vmatpush2.msra.mxu0 0.0
        %769 = vmatprep.subr.mxu0 0.0
        %770 = vmatpush2.msra.mxu0 0.0
        %771 = vmatprep.subr.mxu0 0.0
        %772 = vmatpush2.msra.mxu0 0.0
        %773 = vmatprep.subr.mxu0 0.0
        %774 = vmatpush2.msra.mxu0 0.0
        %775 = vmatprep.subr.mxu0 0.0
        %776 = vmatpush2.msra.mxu0 0.0
        %777 = vmatprep.subr.mxu0 0.0
        %778 = vmatpush2.msra.mxu0 0.0
        %779 = vmatprep.subr.mxu0 0.0
        %780 = vmatpush2.msra.mxu0 0.0
        %781 = vmatprep.subr.mxu0 0.0
        %782 = vmatpush2.msra.mxu0 0.0
        %783 = vmatprep.subr.mxu0 0.0
        %784 = vmatpush2.msra.mxu0 0.0
        %785 = vmatprep.subr.mxu0 0.0
        %786 = vmatpush2.msra.mxu0 0.0
        %787 = vmatprep.subr.mxu0 0.0
        %788 = vmatpush2.msra.mxu0 0.0
        %789 = vmatprep.subr.mxu0 0.0
        %790 = vmatpush2.msra.mxu0 0.0
        %791 = vmatprep.subr.mxu0 0.0
        %792 = vmatpush2.msra.mxu0 0.0
        %793 = vmatprep.subr.mxu0 0.0
        %794 = vmatpush2.msra.mxu0 0.0
        %795 = vmatprep.subr.mxu0 0.0
        %796 = vmatpush2.msra.mxu0 0.0
        %797 = vmatprep.mubr.f32.mxu0 0.0
        %798 = vmatmul.mubr.f32.gmra.mxu0 %v728
        %v799 = vpop.f32.mrf.mxu0
        %v800 = vadd.f32 0.0, %v799
        %v801 = vpop.f32.mrf.mxu0
        %802 = vdwg.mxu0
        %804 = vset.pattern.permute.xlu0 0
        %805 = vperm.xlu0 %804, %v800
        %v806 = vpop.permute.xlu0 %805
        %v808 = vsub.f32 %v645, %v806
        %v809 = vmul.f32 %v808, %v808
        %810 = vadd.xlane.f32.xlu0 %v809
        %v811 = vpop.xlane.xlu0 %810
        %812 = vmatprep.subr.mxu0 0.0
        %813 = vmatpush1.msra.mxu0 0.0
        %814 = vmatprep.subr.mxu0 0.0
        %815 = vmatpush1.msra.mxu0 0.0
        %816 = vmatprep.subr.mxu0 0.0
        %817 = vmatpush1.msra.mxu0 0.0
        %818 = vmatprep.subr.mxu0 0.0
        %819 = vmatpush1.msra.mxu0 0.0
        %820 = vmatprep.subr.mxu0 0.0
        %821 = vmatpush1.msra.mxu0 0.0
        %822 = vmatprep.subr.mxu0 0.0
        %823 = vmatpush1.msra.mxu0 0.0
        %824 = vmatprep.subr.mxu0 0.0
        %825 = vmatpush1.msra.mxu0 0.0
        %826 = vmatprep.subr.mxu0 0.0
        %827 = vmatpush1.msra.mxu0 0.0
        %828 = vmatprep.subr.mxu0 0.0
        %829 = vmatpush1.msra.mxu0 0.0
        %830 = vmatprep.subr.mxu0 0.0
        %831 = vmatpush1.msra.mxu0 0.0
        %832 = vmatprep.subr.mxu0 0.0
        %833 = vmatpush1.msra.mxu0 0.0
        %834 = vmatprep.subr.mxu0 0.0
        %835 = vmatpush1.msra.mxu0 0.0
        %836 = vmatprep.subr.mxu0 0.0
        %837 = vmatpush1.msra.mxu0 0.0
        %838 = vmatprep.subr.mxu0 0.0
        %839 = vmatpush1.msra.mxu0 0.0
        %840 = vmatprep.subr.mxu0 0.0
        %841 = vmatpush1.msra.mxu0 0.0
        %842 = vmatprep.subr.mxu0 0.0
        %843 = vmatpush1.msra.mxu0 %v811
        %844 = vmatprep.subr.mxu0 0.0
        %845 = vmatpush2.msra.mxu0 0.0
        %846 = vmatprep.subr.mxu0 0.0
        %847 = vmatpush2.msra.mxu0 0.0
        %848 = vmatprep.subr.mxu0 0.0
        %849 = vmatpush2.msra.mxu0 0.0
        %850 = vmatprep.subr.mxu0 0.0
        %851 = vmatpush2.msra.mxu0 0.0
        %852 = vmatprep.subr.mxu0 0.0
        %853 = vmatpush2.msra.mxu0 0.0
        %854 = vmatprep.subr.mxu0 0.0
        %855 = vmatpush2.msra.mxu0 0.0
        %856 = vmatprep.subr.mxu0 0.0
        %857 = vmatpush2.msra.mxu0 0.0
        %858 = vmatprep.subr.mxu0 0.0
        %859 = vmatpush2.msra.mxu0 0.0
        %860 = vmatprep.subr.mxu0 0.0
        %861 = vmatpush2.msra.mxu0 0.0
        %862 = vmatprep.subr.mxu0 0.0
        %863 = vmatpush2.msra.mxu0 0.0
        %864 = vmatprep.subr.mxu0 0.0
        %865 = vmatpush2.msra.mxu0 0.0
        %866 = vmatprep.subr.mxu0 0.0
        %867 = vmatpush2.msra.mxu0 0.0
        %868 = vmatprep.subr.mxu0 0.0
        %869 = vmatpush2.msra.mxu0 0.0
        %870 = vmatprep.subr.mxu0 0.0
        %871 = vmatpush2.msra.mxu0 0.0
        %872 = vmatprep.subr.mxu0 0.0
        %873 = vmatpush2.msra.mxu0 0.0
        %874 = vmatprep.subr.mxu0 0.0
        %875 = vmatpush2.msra.mxu0 0.0
        %876 = vmatprep.mubr.f32.mxu0 0.0
        %877 = vmatmul.mubr.f32.gmra.mxu0 %v652
        %v878 = vpop.f32.mrf.mxu0
        %v879 = vadd.f32 0.0, %v878
        %v880 = vpop.f32.mrf.mxu0
        %881 = vdwg.mxu0
        %v882 = vmul.f32 %v879, %v724
        %v883 = vadd.f32 %v882, 1e-05
        %v884 = vrsqrt.pop %v883
        %v886 = vsel %vm499, %v884, 0
        %888 = vmatprep.subr.mxu0 0.0
        %889 = vmatpush1.msra.mxu0 0.0
        %890 = vmatprep.subr.mxu0 0.0
        %891 = vmatpush1.msra.mxu0 0.0
        %892 = vmatprep.subr.mxu0 0.0
        %893 = vmatpush1.msra.mxu0 0.0
        %894 = vmatprep.subr.mxu0 0.0
        %895 = vmatpush1.msra.mxu0 0.0
        %896 = vmatprep.subr.mxu0 0.0
        %897 = vmatpush1.msra.mxu0 0.0
        %898 = vmatprep.subr.mxu0 0.0
        %899 = vmatpush1.msra.mxu0 0.0
        %900 = vmatprep.subr.mxu0 0.0
        %901 = vmatpush1.msra.mxu0 0.0
        %902 = vmatprep.subr.mxu0 0.0
        %903 = vmatpush1.msra.mxu0 0.0
        %904 = vmatprep.subr.mxu0 0.0
        %905 = vmatpush1.msra.mxu0 0.0
        %906 = vmatprep.subr.mxu0 0.0
        %907 = vmatpush1.msra.mxu0 0.0
        %908 = vmatprep.subr.mxu0 0.0
        %909 = vmatpush1.msra.mxu0 0.0
        %910 = vmatprep.subr.mxu0 0.0
        %911 = vmatpush1.msra.mxu0 0.0
        %912 = vmatprep.subr.mxu0 0.0
        %913 = vmatpush1.msra.mxu0 0.0
        %914 = vmatprep.subr.mxu0 0.0
        %915 = vmatpush1.msra.mxu0 0.0
        %916 = vmatprep.subr.mxu0 0.0
        %917 = vmatpush1.msra.mxu0 0.0
        %918 = vmatprep.subr.mxu0 0.0
        %919 = vmatpush1.msra.mxu0 %v886
        %920 = vmatprep.subr.mxu0 0.0
        %921 = vmatpush2.msra.mxu0 0.0
        %922 = vmatprep.subr.mxu0 0.0
        %923 = vmatpush2.msra.mxu0 0.0
        %924 = vmatprep.subr.mxu0 0.0
        %925 = vmatpush2.msra.mxu0 0.0
        %926 = vmatprep.subr.mxu0 0.0
        %927 = vmatpush2.msra.mxu0 0.0
        %928 = vmatprep.subr.mxu0 0.0
        %929 = vmatpush2.msra.mxu0 0.0
        %930 = vmatprep.subr.mxu0 0.0
        %931 = vmatpush2.msra.mxu0 0.0
        %932 = vmatprep.subr.mxu0 0.0
        %933 = vmatpush2.msra.mxu0 0.0
        %934 = vmatprep.subr.mxu0 0.0
        %935 = vmatpush2.msra.mxu0 0.0
        %936 = vmatprep.subr.mxu0 0.0
        %937 = vmatpush2.msra.mxu0 0.0
        %938 = vmatprep.subr.mxu0 0.0
        %939 = vmatpush2.msra.mxu0 0.0
        %940 = vmatprep.subr.mxu0 0.0
        %941 = vmatpush2.msra.mxu0 0.0
        %942 = vmatprep.subr.mxu0 0.0
        %943 = vmatpush2.msra.mxu0 0.0
        %944 = vmatprep.subr.mxu0 0.0
        %945 = vmatpush2.msra.mxu0 0.0
        %946 = vmatprep.subr.mxu0 0.0
        %947 = vmatpush2.msra.mxu0 0.0
        %948 = vmatprep.subr.mxu0 0.0
        %949 = vmatpush2.msra.mxu0 0.0
        %950 = vmatprep.subr.mxu0 0.0
        %951 = vmatpush2.msra.mxu0 0.0
        %952 = vmatprep.mubr.f32.mxu0 0.0
        %953 = vmatmul.mubr.f32.gmra.mxu0 %v728
        %v954 = vpop.f32.mrf.mxu0
        %v955 = vadd.f32 0.0, %v954
        %v956 = vpop.f32.mrf.mxu0
        %957 = vdwg.mxu0
        %v958 = vmul.f32 %v646, %v955
        %v959 = vmul.f32 %v800, %v958
        %v960 = vsub.f32 %v647, %v959
        %962 = vset.pattern.permute.xlu0 0
        %963 = vperm.xlu0 %962, %v958
        %v964 = vpop.permute.xlu0 %963
        %v966 = vmul.f32 %v645, %v964
        %968 = vset.pattern.permute.xlu0 0
        %969 = vperm.xlu0 %968, %v960
        %v970 = vpop.permute.xlu0 %969
        %v972 = vadd.f32 %v966, %v970
        %v973 = vxor.u32 %v972, 2147483648
        %v974 = vmul.f32 %v973, 1.442695
        %v975 = vpow.pop %v974
        %v976 = vadd.f32 %v975, 1.0
        %v977 = vrcp.pop %v976
        %v978 = vmul.f32 1.0, %v977
        %v979 = vmul.f32 %v972, %v978
        %v980 = vld [vmem:[%s479] sm:$0xff]
        %982 = vset.pattern.permute.xlu0 0
        %983 = vperm.xlu0 %982, %v980
        %v984 = vpop.permute.xlu0 %983
        %v986 = vadd.f32 %v979, %v984
        %v987 = vld [vmem:[%s7] sm:$0xff]
        %v988 = vpack.c.bf16 %v986, %v986
        %v989 = vld [vmem:[%s6] sm:$0xf]
        %v991 = vsel %vm650, %v989, 0
        %vm993 = vcmask 1043456
        %v995 = vsel %vm993, %v988, 0
        %997 = vmatprep.subr.bf16.mxu0 0
        %998 = vmatpush1.bf16.msra.mxu0 0
        %999 = vmatprep.subr.bf16.mxu0 0
        %1000 = vmatpush1.bf16.msra.mxu0 0
        %1001 = vmatprep.subr.bf16.mxu0 0
        %1002 = vmatpush1.bf16.msra.mxu0 0
        %1003 = vmatprep.subr.bf16.mxu0 0
        %1004 = vmatpush1.bf16.msra.mxu0 0
        %1005 = vmatprep.subr.bf16.mxu0 0
        %1006 = vmatpush1.bf16.msra.mxu0 0
        %1007 = vmatprep.subr.bf16.mxu0 0
        %1008 = vmatpush1.bf16.msra.mxu0 0
        %1009 = vmatprep.subr.bf16.mxu0 0
        %1010 = vmatpush1.bf16.msra.mxu0 0
        %1011 = vmatprep.subr.bf16.mxu0 0
        %1012 = vmatpush1.bf16.msra.mxu0 %v995
        %1013 = vmatprep.subr.bf16.mxu0 0
        %1014 = vmatpush2.bf16.msra.mxu0 0
        %1015 = vmatprep.subr.bf16.mxu0 0
        %1016 = vmatpush2.bf16.msra.mxu0 0
        %1017 = vmatprep.subr.bf16.mxu0 0
        %1018 = vmatpush2.bf16.msra.mxu0 0
        %1019 = vmatprep.subr.bf16.mxu0 0
        %1020 = vmatpush2.bf16.msra.mxu0 0
        %1021 = vmatprep.subr.bf16.mxu0 0
        %1022 = vmatpush2.bf16.msra.mxu0 0
        %1023 = vmatprep.subr.bf16.mxu0 0
        %1024 = vmatpush2.bf16.msra.mxu0 0
        %1025 = vmatprep.subr.bf16.mxu0 0
        %1026 = vmatpush2.bf16.msra.mxu0 0
        %1027 = vmatprep.subr.bf16.mxu0 0
        %1028 = vmatpush2.bf16.msra.mxu0 0
        %1029 = vmatprep.mubr.bf16.mxu0 0
        %1030 = vmatmul.mubr.bf16.gmra.mxu0 %v991
        %v1031 = vpop.f32.mrf.mxu0
        %v1032 = vadd.f32 0.0, %v1031
        %v1033 = vpop.f32.mrf.mxu0
        %v1034 = vpop.f32.mrf.mxu0
        %v1035 = vpop.f32.mrf.mxu0
        %1036 = vdwg.mxu0
        %s1037 = scalar_lea.vmem %s6, 4
        %v1038 = vld [vmem:[%s1037] sm:$0xf]
        %s1039 = scalar_lea.vmem %s6, 8
        %v1040 = vld [vmem:[%s1039] sm:$0xf]
        %v1042 = vsel %vm650, %v1040, 0
        %1044 = vmatprep.subr.bf16.mxu0 0
        %1045 = vmatpush1.bf16.msra.mxu0 0
        %1046 = vmatprep.subr.bf16.mxu0 0
        %1047 = vmatpush1.bf16.msra.mxu0 0
        %1048 = vmatprep.subr.bf16.mxu0 0
        %1049 = vmatpush1.bf16.msra.mxu0 0
        %1050 = vmatprep.subr.bf16.mxu0 0
        %1051 = vmatpush1.bf16.msra.mxu0 0
        %1052 = vmatprep.subr.bf16.mxu0 0
        %1053 = vmatpush1.bf16.msra.mxu0 0
        %1054 = vmatprep.subr.bf16.mxu0 0
        %1055 = vmatpush1.bf16.msra.mxu0 0
        %1056 = vmatprep.subr.bf16.mxu0 0
        %1057 = vmatpush1.bf16.msra.mxu0 0
        %1058 = vmatprep.subr.bf16.mxu0 0
        %1059 = vmatpush1.bf16.msra.mxu0 %v995
        %1060 = vmatprep.subr.bf16.mxu0 0
        %1061 = vmatpush2.bf16.msra.mxu0 0
        %1062 = vmatprep.subr.bf16.mxu0 0
        %1063 = vmatpush2.bf16.msra.mxu0 0
        %1064 = vmatprep.subr.bf16.mxu0 0
        %1065 = vmatpush2.bf16.msra.mxu0 0
        %1066 = vmatprep.subr.bf16.mxu0 0
        %1067 = vmatpush2.bf16.msra.mxu0 0
        %1068 = vmatprep.subr.bf16.mxu0 0
        %1069 = vmatpush2.bf16.msra.mxu0 0
        %1070 = vmatprep.subr.bf16.mxu0 0
        %1071 = vmatpush2.bf16.msra.mxu0 0
        %1072 = vmatprep.subr.bf16.mxu0 0
        %1073 = vmatpush2.bf16.msra.mxu0 0
        %1074 = vmatprep.subr.bf16.mxu0 0
        %1075 = vmatpush2.bf16.msra.mxu0 0
        %1076 = vmatprep.mubr.bf16.mxu0 0
        %1077 = vmatmul.mubr.bf16.gmra.mxu0 %v1042
        %v1078 = vpop.f32.mrf.mxu0
        %v1079 = vadd.f32 0.0, %v1078
        %v1080 = vpop.f32.mrf.mxu0
        %v1081 = vpop.f32.mrf.mxu0
        %v1082 = vpop.f32.mrf.mxu0
        %1083 = vdwg.mxu0
        %1084 = vrot.lane.b32.xlu0 %v1032, 1
        %v1085 = vpop.permute.xlu0 %1084
        %v1086 = vmul.f32 %v1085, %v488
        %v1088 = vsel %vm650, %v1038, 0
        %1090 = vmatprep.subr.bf16.mxu0 0
        %1091 = vmatpush1.bf16.msra.mxu0 0
        %1092 = vmatprep.subr.bf16.mxu0 0
        %1093 = vmatpush1.bf16.msra.mxu0 0
        %1094 = vmatprep.subr.bf16.mxu0 0
        %1095 = vmatpush1.bf16.msra.mxu0 0
        %1096 = vmatprep.subr.bf16.mxu0 0
        %1097 = vmatpush1.bf16.msra.mxu0 0
        %1098 = vmatprep.subr.bf16.mxu0 0
        %1099 = vmatpush1.bf16.msra.mxu0 0
        %1100 = vmatprep.subr.bf16.mxu0 0
        %1101 = vmatpush1.bf16.msra.mxu0 0
        %1102 = vmatprep.subr.bf16.mxu0 0
        %1103 = vmatpush1.bf16.msra.mxu0 0
        %1104 = vmatprep.subr.bf16.mxu0 0
        %1105 = vmatpush1.bf16.msra.mxu0 %v995
        %1106 = vmatprep.subr.bf16.mxu0 0
        %1107 = vmatpush2.bf16.msra.mxu0 0
        %1108 = vmatprep.subr.bf16.mxu0 0
        %1109 = vmatpush2.bf16.msra.mxu0 0
        %1110 = vmatprep.subr.bf16.mxu0 0
        %1111 = vmatpush2.bf16.msra.mxu0 0
        %1112 = vmatprep.subr.bf16.mxu0 0
        %1113 = vmatpush2.bf16.msra.mxu0 0
        %1114 = vmatprep.subr.bf16.mxu0 0
        %1115 = vmatpush2.bf16.msra.mxu0 0
        %1116 = vmatprep.subr.bf16.mxu0 0
        %1117 = vmatpush2.bf16.msra.mxu0 0
        %1118 = vmatprep.subr.bf16.mxu0 0
        %1119 = vmatpush2.bf16.msra.mxu0 0
        %1120 = vmatprep.subr.bf16.mxu0 0
        %1121 = vmatpush2.bf16.msra.mxu0 0
        %1122 = vmatprep.mubr.bf16.mxu0 0
        %1123 = vmatmul.mubr.bf16.gmra.mxu0 %v1088
        %v1124 = vpop.f32.mrf.mxu0
        %v1125 = vadd.f32 %v1086, %v1124
        %v1126 = vpop.f32.mrf.mxu0
        %v1127 = vpop.f32.mrf.mxu0
        %v1128 = vpop.f32.mrf.mxu0
        %1129 = vdwg.mxu0
        %1130 = vrot.lane.b32.xlu0 %v1079, 127
        %v1131 = vpop.permute.xlu0 %1130
        %v1132 = vmul.f32 %v1131, %v491
        %v1133 = vadd.f32 %v1125, %v1132
        %1135 = vset.pattern.permute.xlu0 0
        %1136 = vperm.xlu0 %1135, %v987
        %v1137 = vpop.permute.xlu0 %1136
        %v1139 = vadd.f32 %v1133, %v1137
        %v1140 = vld [vmem:[%s8] sm:$0xff]
        %v1141 = vld [vmem:[%s9] sm:$0xff]
        %1142 = vadd.xlane.f32.xlu0 %v1139
        %v1143 = vpop.xlane.xlu0 %1142
        %1144 = vmatprep.subr.mxu0 0.0
        %1145 = vmatpush1.msra.mxu0 0.0
        %1146 = vmatprep.subr.mxu0 0.0
        %1147 = vmatpush1.msra.mxu0 0.0
        %1148 = vmatprep.subr.mxu0 0.0
        %1149 = vmatpush1.msra.mxu0 0.0
        %1150 = vmatprep.subr.mxu0 0.0
        %1151 = vmatpush1.msra.mxu0 0.0
        %1152 = vmatprep.subr.mxu0 0.0
        %1153 = vmatpush1.msra.mxu0 0.0
        %1154 = vmatprep.subr.mxu0 0.0
        %1155 = vmatpush1.msra.mxu0 0.0
        %1156 = vmatprep.subr.mxu0 0.0
        %1157 = vmatpush1.msra.mxu0 0.0
        %1158 = vmatprep.subr.mxu0 0.0
        %1159 = vmatpush1.msra.mxu0 0.0
        %1160 = vmatprep.subr.mxu0 0.0
        %1161 = vmatpush1.msra.mxu0 0.0
        %1162 = vmatprep.subr.mxu0 0.0
        %1163 = vmatpush1.msra.mxu0 0.0
        %1164 = vmatprep.subr.mxu0 0.0
        %1165 = vmatpush1.msra.mxu0 0.0
        %1166 = vmatprep.subr.mxu0 0.0
        %1167 = vmatpush1.msra.mxu0 0.0
        %1168 = vmatprep.subr.mxu0 0.0
        %1169 = vmatpush1.msra.mxu0 0.0
        %1170 = vmatprep.subr.mxu0 0.0
        %1171 = vmatpush1.msra.mxu0 0.0
        %1172 = vmatprep.subr.mxu0 0.0
        %1173 = vmatpush1.msra.mxu0 0.0
        %1174 = vmatprep.subr.mxu0 0.0
        %1175 = vmatpush1.msra.mxu0 %v1143
        %1176 = vmatprep.subr.mxu0 0.0
        %1177 = vmatpush2.msra.mxu0 0.0
        %1178 = vmatprep.subr.mxu0 0.0
        %1179 = vmatpush2.msra.mxu0 0.0
        %1180 = vmatprep.subr.mxu0 0.0
        %1181 = vmatpush2.msra.mxu0 0.0
        %1182 = vmatprep.subr.mxu0 0.0
        %1183 = vmatpush2.msra.mxu0 0.0
        %1184 = vmatprep.subr.mxu0 0.0
        %1185 = vmatpush2.msra.mxu0 0.0
        %1186 = vmatprep.subr.mxu0 0.0
        %1187 = vmatpush2.msra.mxu0 0.0
        %1188 = vmatprep.subr.mxu0 0.0
        %1189 = vmatpush2.msra.mxu0 0.0
        %1190 = vmatprep.subr.mxu0 0.0
        %1191 = vmatpush2.msra.mxu0 0.0
        %1192 = vmatprep.subr.mxu0 0.0
        %1193 = vmatpush2.msra.mxu0 0.0
        %1194 = vmatprep.subr.mxu0 0.0
        %1195 = vmatpush2.msra.mxu0 0.0
        %1196 = vmatprep.subr.mxu0 0.0
        %1197 = vmatpush2.msra.mxu0 0.0
        %1198 = vmatprep.subr.mxu0 0.0
        %1199 = vmatpush2.msra.mxu0 0.0
        %1200 = vmatprep.subr.mxu0 0.0
        %1201 = vmatpush2.msra.mxu0 0.0
        %1202 = vmatprep.subr.mxu0 0.0
        %1203 = vmatpush2.msra.mxu0 0.0
        %1204 = vmatprep.subr.mxu0 0.0
        %1205 = vmatpush2.msra.mxu0 0.0
        %1206 = vmatprep.subr.mxu0 0.0
        %1207 = vmatpush2.msra.mxu0 0.0
        %1208 = vmatprep.mubr.f32.mxu0 0.0
        %1209 = vmatmul.mubr.f32.gmra.mxu0 %v652
        %v1210 = vpop.f32.mrf.mxu0
        %v1211 = vadd.f32 0.0, %v1210
        %v1212 = vpop.f32.mrf.mxu0
        %1213 = vdwg.mxu0
        %v1214 = vmul.f32 %v1211, %v724
        %v1216 = vsel %vm499, %v1214, 0
        %1218 = vmatprep.subr.mxu0 0.0
        %1219 = vmatpush1.msra.mxu0 0.0
        %1220 = vmatprep.subr.mxu0 0.0
        %1221 = vmatpush1.msra.mxu0 0.0
        %1222 = vmatprep.subr.mxu0 0.0
        %1223 = vmatpush1.msra.mxu0 0.0
        %1224 = vmatprep.subr.mxu0 0.0
        %1225 = vmatpush1.msra.mxu0 0.0
        %1226 = vmatprep.subr.mxu0 0.0
        %1227 = vmatpush1.msra.mxu0 0.0
        %1228 = vmatprep.subr.mxu0 0.0
        %1229 = vmatpush1.msra.mxu0 0.0
        %1230 = vmatprep.subr.mxu0 0.0
        %1231 = vmatpush1.msra.mxu0 0.0
        %1232 = vmatprep.subr.mxu0 0.0
        %1233 = vmatpush1.msra.mxu0 0.0
        %1234 = vmatprep.subr.mxu0 0.0
        %1235 = vmatpush1.msra.mxu0 0.0
        %1236 = vmatprep.subr.mxu0 0.0
        %1237 = vmatpush1.msra.mxu0 0.0
        %1238 = vmatprep.subr.mxu0 0.0
        %1239 = vmatpush1.msra.mxu0 0.0
        %1240 = vmatprep.subr.mxu0 0.0
        %1241 = vmatpush1.msra.mxu0 0.0
        %1242 = vmatprep.subr.mxu0 0.0
        %1243 = vmatpush1.msra.mxu0 0.0
        %1244 = vmatprep.subr.mxu0 0.0
        %1245 = vmatpush1.msra.mxu0 0.0
        %1246 = vmatprep.subr.mxu0 0.0
        %1247 = vmatpush1.msra.mxu0 0.0
        %1248 = vmatprep.subr.mxu0 0.0
        %1249 = vmatpush1.msra.mxu0 %v1216
        %1250 = vmatprep.subr.mxu0 0.0
        %1251 = vmatpush2.msra.mxu0 0.0
        %1252 = vmatprep.subr.mxu0 0.0
        %1253 = vmatpush2.msra.mxu0 0.0
        %1254 = vmatprep.subr.mxu0 0.0
        %1255 = vmatpush2.msra.mxu0 0.0
        %1256 = vmatprep.subr.mxu0 0.0
        %1257 = vmatpush2.msra.mxu0 0.0
        %1258 = vmatprep.subr.mxu0 0.0
        %1259 = vmatpush2.msra.mxu0 0.0
        %1260 = vmatprep.subr.mxu0 0.0
        %1261 = vmatpush2.msra.mxu0 0.0
        %1262 = vmatprep.subr.mxu0 0.0
        %1263 = vmatpush2.msra.mxu0 0.0
        %1264 = vmatprep.subr.mxu0 0.0
        %1265 = vmatpush2.msra.mxu0 0.0
        %1266 = vmatprep.subr.mxu0 0.0
        %1267 = vmatpush2.msra.mxu0 0.0
        %1268 = vmatprep.subr.mxu0 0.0
        %1269 = vmatpush2.msra.mxu0 0.0
        %1270 = vmatprep.subr.mxu0 0.0
        %1271 = vmatpush2.msra.mxu0 0.0
        %1272 = vmatprep.subr.mxu0 0.0
        %1273 = vmatpush2.msra.mxu0 0.0
        %1274 = vmatprep.subr.mxu0 0.0
        %1275 = vmatpush2.msra.mxu0 0.0
        %1276 = vmatprep.subr.mxu0 0.0
        %1277 = vmatpush2.msra.mxu0 0.0
        %1278 = vmatprep.subr.mxu0 0.0
        %1279 = vmatpush2.msra.mxu0 0.0
        %1280 = vmatprep.subr.mxu0 0.0
        %1281 = vmatpush2.msra.mxu0 0.0
        %1282 = vmatprep.mubr.f32.mxu0 0.0
        %1283 = vmatmul.mubr.f32.gmra.mxu0 %v728
        %v1284 = vpop.f32.mrf.mxu0
        %v1285 = vadd.f32 0.0, %v1284
        %v1286 = vpop.f32.mrf.mxu0
        %1287 = vdwg.mxu0
        %1289 = vset.pattern.permute.xlu0 0
        %1290 = vperm.xlu0 %1289, %v1285
        %v1291 = vpop.permute.xlu0 %1290
        %v1293 = vsub.f32 %v1139, %v1291
        %v1294 = vmul.f32 %v1293, %v1293
        %1295 = vadd.xlane.f32.xlu0 %v1294
        %v1296 = vpop.xlane.xlu0 %1295
        %1297 = vmatprep.subr.mxu0 0.0
        %1298 = vmatpush1.msra.mxu0 0.0
        %1299 = vmatprep.subr.mxu0 0.0
        %1300 = vmatpush1.msra.mxu0 0.0
        %1301 = vmatprep.subr.mxu0 0.0
        %1302 = vmatpush1.msra.mxu0 0.0
        %1303 = vmatprep.subr.mxu0 0.0
        %1304 = vmatpush1.msra.mxu0 0.0
        %1305 = vmatprep.subr.mxu0 0.0
        %1306 = vmatpush1.msra.mxu0 0.0
        %1307 = vmatprep.subr.mxu0 0.0
        %1308 = vmatpush1.msra.mxu0 0.0
        %1309 = vmatprep.subr.mxu0 0.0
        %1310 = vmatpush1.msra.mxu0 0.0
        %1311 = vmatprep.subr.mxu0 0.0
        %1312 = vmatpush1.msra.mxu0 0.0
        %1313 = vmatprep.subr.mxu0 0.0
        %1314 = vmatpush1.msra.mxu0 0.0
        %1315 = vmatprep.subr.mxu0 0.0
        %1316 = vmatpush1.msra.mxu0 0.0
        %1317 = vmatprep.subr.mxu0 0.0
        %1318 = vmatpush1.msra.mxu0 0.0
        %1319 = vmatprep.subr.mxu0 0.0
        %1320 = vmatpush1.msra.mxu0 0.0
        %1321 = vmatprep.subr.mxu0 0.0
        %1322 = vmatpush1.msra.mxu0 0.0
        %1323 = vmatprep.subr.mxu0 0.0
        %1324 = vmatpush1.msra.mxu0 0.0
        %1325 = vmatprep.subr.mxu0 0.0
        %1326 = vmatpush1.msra.mxu0 0.0
        %1327 = vmatprep.subr.mxu0 0.0
        %1328 = vmatpush1.msra.mxu0 %v1296
        %1329 = vmatprep.subr.mxu0 0.0
        %1330 = vmatpush2.msra.mxu0 0.0
        %1331 = vmatprep.subr.mxu0 0.0
        %1332 = vmatpush2.msra.mxu0 0.0
        %1333 = vmatprep.subr.mxu0 0.0
        %1334 = vmatpush2.msra.mxu0 0.0
        %1335 = vmatprep.subr.mxu0 0.0
        %1336 = vmatpush2.msra.mxu0 0.0
        %1337 = vmatprep.subr.mxu0 0.0
        %1338 = vmatpush2.msra.mxu0 0.0
        %1339 = vmatprep.subr.mxu0 0.0
        %1340 = vmatpush2.msra.mxu0 0.0
        %1341 = vmatprep.subr.mxu0 0.0
        %1342 = vmatpush2.msra.mxu0 0.0
        %1343 = vmatprep.subr.mxu0 0.0
        %1344 = vmatpush2.msra.mxu0 0.0
        %1345 = vmatprep.subr.mxu0 0.0
        %1346 = vmatpush2.msra.mxu0 0.0
        %1347 = vmatprep.subr.mxu0 0.0
        %1348 = vmatpush2.msra.mxu0 0.0
        %1349 = vmatprep.subr.mxu0 0.0
        %1350 = vmatpush2.msra.mxu0 0.0
        %1351 = vmatprep.subr.mxu0 0.0
        %1352 = vmatpush2.msra.mxu0 0.0
        %1353 = vmatprep.subr.mxu0 0.0
        %1354 = vmatpush2.msra.mxu0 0.0
        %1355 = vmatprep.subr.mxu0 0.0
        %1356 = vmatpush2.msra.mxu0 0.0
        %1357 = vmatprep.subr.mxu0 0.0
        %1358 = vmatpush2.msra.mxu0 0.0
        %1359 = vmatprep.subr.mxu0 0.0
        %1360 = vmatpush2.msra.mxu0 0.0
        %1361 = vmatprep.mubr.f32.mxu0 0.0
        %1362 = vmatmul.mubr.f32.gmra.mxu0 %v652
        %v1363 = vpop.f32.mrf.mxu0
        %v1364 = vadd.f32 0.0, %v1363
        %v1365 = vpop.f32.mrf.mxu0
        %1366 = vdwg.mxu0
        %v1367 = vmul.f32 %v1364, %v724
        %v1368 = vadd.f32 %v1367, 1e-05
        %v1369 = vrsqrt.pop %v1368
        %v1371 = vsel %vm499, %v1369, 0
        %1373 = vmatprep.subr.mxu0 0.0
        %1374 = vmatpush1.msra.mxu0 0.0
        %1375 = vmatprep.subr.mxu0 0.0
        %1376 = vmatpush1.msra.mxu0 0.0
        %1377 = vmatprep.subr.mxu0 0.0
        %1378 = vmatpush1.msra.mxu0 0.0
        %1379 = vmatprep.subr.mxu0 0.0
        %1380 = vmatpush1.msra.mxu0 0.0
        %1381 = vmatprep.subr.mxu0 0.0
        %1382 = vmatpush1.msra.mxu0 0.0
        %1383 = vmatprep.subr.mxu0 0.0
        %1384 = vmatpush1.msra.mxu0 0.0
        %1385 = vmatprep.subr.mxu0 0.0
        %1386 = vmatpush1.msra.mxu0 0.0
        %1387 = vmatprep.subr.mxu0 0.0
        %1388 = vmatpush1.msra.mxu0 0.0
        %1389 = vmatprep.subr.mxu0 0.0
        %1390 = vmatpush1.msra.mxu0 0.0
        %1391 = vmatprep.subr.mxu0 0.0
        %1392 = vmatpush1.msra.mxu0 0.0
        %1393 = vmatprep.subr.mxu0 0.0
        %1394 = vmatpush1.msra.mxu0 0.0
        %1395 = vmatprep.subr.mxu0 0.0
        %1396 = vmatpush1.msra.mxu0 0.0
        %1397 = vmatprep.subr.mxu0 0.0
        %1398 = vmatpush1.msra.mxu0 0.0
        %1399 = vmatprep.subr.mxu0 0.0
        %1400 = vmatpush1.msra.mxu0 0.0
        %1401 = vmatprep.subr.mxu0 0.0
        %1402 = vmatpush1.msra.mxu0 0.0
        %1403 = vmatprep.subr.mxu0 0.0
        %1404 = vmatpush1.msra.mxu0 %v1371
        %1405 = vmatprep.subr.mxu0 0.0
        %1406 = vmatpush2.msra.mxu0 0.0
        %1407 = vmatprep.subr.mxu0 0.0
        %1408 = vmatpush2.msra.mxu0 0.0
        %1409 = vmatprep.subr.mxu0 0.0
        %1410 = vmatpush2.msra.mxu0 0.0
        %1411 = vmatprep.subr.mxu0 0.0
        %1412 = vmatpush2.msra.mxu0 0.0
        %1413 = vmatprep.subr.mxu0 0.0
        %1414 = vmatpush2.msra.mxu0 0.0
        %1415 = vmatprep.subr.mxu0 0.0
        %1416 = vmatpush2.msra.mxu0 0.0
        %1417 = vmatprep.subr.mxu0 0.0
        %1418 = vmatpush2.msra.mxu0 0.0
        %1419 = vmatprep.subr.mxu0 0.0
        %1420 = vmatpush2.msra.mxu0 0.0
        %1421 = vmatprep.subr.mxu0 0.0
        %1422 = vmatpush2.msra.mxu0 0.0
        %1423 = vmatprep.subr.mxu0 0.0
        %1424 = vmatpush2.msra.mxu0 0.0
        %1425 = vmatprep.subr.mxu0 0.0
        %1426 = vmatpush2.msra.mxu0 0.0
        %1427 = vmatprep.subr.mxu0 0.0
        %1428 = vmatpush2.msra.mxu0 0.0
        %1429 = vmatprep.subr.mxu0 0.0
        %1430 = vmatpush2.msra.mxu0 0.0
        %1431 = vmatprep.subr.mxu0 0.0
        %1432 = vmatpush2.msra.mxu0 0.0
        %1433 = vmatprep.subr.mxu0 0.0
        %1434 = vmatpush2.msra.mxu0 0.0
        %1435 = vmatprep.subr.mxu0 0.0
        %1436 = vmatpush2.msra.mxu0 0.0
        %1437 = vmatprep.mubr.f32.mxu0 0.0
        %1438 = vmatmul.mubr.f32.gmra.mxu0 %v728
        %v1439 = vpop.f32.mrf.mxu0
        %v1440 = vadd.f32 0.0, %v1439
        %v1441 = vpop.f32.mrf.mxu0
        %1442 = vdwg.mxu0
        %v1443 = vmul.f32 %v1140, %v1440
        %v1444 = vmul.f32 %v1285, %v1443
        %v1445 = vsub.f32 %v1141, %v1444
        %1447 = vset.pattern.permute.xlu0 0
        %1448 = vperm.xlu0 %1447, %v1443
        %v1449 = vpop.permute.xlu0 %1448
        %v1451 = vmul.f32 %v1139, %v1449
        %1453 = vset.pattern.permute.xlu0 0
        %1454 = vperm.xlu0 %1453, %v1445
        %v1455 = vpop.permute.xlu0 %1454
        %v1457 = vadd.f32 %v1451, %v1455
        %v1458 = vxor.u32 %v1457, 2147483648
        %v1459 = vmul.f32 %v1458, 1.442695
        %v1460 = vpow.pop %v1459
        %v1461 = vadd.f32 %v1460, 1.0
        %v1462 = vrcp.pop %v1461
        %v1463 = vmul.f32 1.0, %v1462
        %v1464 = vmul.f32 %v1457, %v1463
        %v1465 = vld [vmem:[%s12] sm:$0xf]
        %v1466 = vld [vmem:[%s13] sm:$0xff]
        %1468 = vset.pattern.permute.xlu0 0
        %1469 = vperm.xlu0 %1468, %v1466
        %v1470 = vpop.permute.xlu0 %1469
        %v1473 = vsel %vm495, %v1465, 0
        %1475 = vmatprep.subr.bf16.mxu0 0
        %1476 = vmatpush1.bf16.msra.mxu0 0
        %1477 = vmatprep.subr.bf16.mxu0 0
        %1478 = vmatpush1.bf16.msra.mxu0 0
        %1479 = vmatprep.subr.bf16.mxu0 0
        %1480 = vmatpush1.bf16.msra.mxu0 0
        %1481 = vmatprep.subr.bf16.mxu0 0
        %1482 = vmatpush1.bf16.msra.mxu0 0
        %1483 = vmatprep.subr.bf16.mxu0 0
        %1484 = vmatpush1.bf16.msra.mxu0 0
        %1485 = vmatprep.subr.bf16.mxu0 0
        %1486 = vmatpush1.bf16.msra.mxu0 0
        %1487 = vmatprep.subr.bf16.mxu0 0
        %1488 = vmatpush1.bf16.msra.mxu0 0
        %1489 = vmatprep.subr.bf16.mxu0 0
        %1490 = vmatpush1.bf16.msra.mxu0 %v501
        %1491 = vmatprep.subr.bf16.mxu0 0
        %1492 = vmatpush2.bf16.msra.mxu0 0
        %1493 = vmatprep.subr.bf16.mxu0 0
        %1494 = vmatpush2.bf16.msra.mxu0 0
        %1495 = vmatprep.subr.bf16.mxu0 0
        %1496 = vmatpush2.bf16.msra.mxu0 0
        %1497 = vmatprep.subr.bf16.mxu0 0
        %1498 = vmatpush2.bf16.msra.mxu0 0
        %1499 = vmatprep.subr.bf16.mxu0 0
        %1500 = vmatpush2.bf16.msra.mxu0 0
        %1501 = vmatprep.subr.bf16.mxu0 0
        %1502 = vmatpush2.bf16.msra.mxu0 0
        %1503 = vmatprep.subr.bf16.mxu0 0
        %1504 = vmatpush2.bf16.msra.mxu0 0
        %1505 = vmatprep.subr.bf16.mxu0 0
        %1506 = vmatpush2.bf16.msra.mxu0 0
        %1507 = vmatprep.mubr.bf16.mxu0 0
        %1508 = vmatmul.mubr.bf16.gmra.mxu0 %v1473
        %v1509 = vpop.f32.mrf.mxu0
        %v1510 = vadd.f32 %v1470, %v1509
        %v1511 = vpop.f32.mrf.mxu0
        %v1512 = vpop.f32.mrf.mxu0
        %v1513 = vpop.f32.mrf.mxu0
        %1514 = vdwg.mxu0
        %v1515 = vadd.f32 %v1464, %v1510
        %1516 = vst [vmem:[%s471] sm:$0xff] %v1515
        %s1517 = sand.u32 %s340, 1
        %s1518 = scalar_lea.sflag [#allocation3], %s1517
        %s1519 = sand.u32 %s340, 1
        %s1520 = smul.addr %s1519, 8
        %s1521 = scalar_lea.vmem [#allocation2], %s1520
        // Predicated region
        $region77: #{tpu_custom_call.1} parent=75 // pred_check
          %p1522 = pneg %p350
        $region78: #{tpu_custom_call.1} parent=75 // pred_check_branch
          %1524 = sbr.rel (%p1522) target = $region80
        $region79: #{tpu_custom_call.1} parent=75 // pred_region
          %s1526 = ssub.s32 128, 128
          %1527 = vsyncadd %s1518, %s1526
          %s1528 = smul.addr %s28, 128
          %s1529 = scalar_lea.hbm %s14, %s1528
          %s1531 = sshll.u32 %s1521, 4
          %s1532 = int_to_ptr.vmem [resolvable:$true] %s1531
          %1534 = dma.vmem_to_hbm [thread:$0]  %s1532, 128, %s1529, %s1518
        $region80: #{tpu_custom_call.1} parent=75 // pred_fallthru
          _
      $region76: #{tpu_custom_call.1} parent=5 // pred_fallthru
        _
      %p1535 = scmp.le.s32.totalorder 2, %s23
      // Predicated region
      $region81: #{tpu_custom_call.1} parent=5 // pred_check
        %p1536 = pneg %p1535
      $region82: #{tpu_custom_call.1} parent=5 // pred_check_branch
        %1538 = sbr.rel (%p1536) target = $region84
      $region83: #{tpu_custom_call.1} parent=5 // pred_region
        %s1539 = ssub.s32 %s23, 2
        // Predicated region
        $region85: #{tpu_custom_call.1} parent=83 // pred_check
          %p1540 = pneg %p356
        $region86: #{tpu_custom_call.1} parent=83 // pred_check_branch
          %1542 = sbr.rel (%p1540) target = $region88
        $region87: #{tpu_custom_call.1} parent=83 // pred_region
          %s1543 = sand.u32 %s341, 1
          %s1544 = scalar_lea.sflag [#allocation3], %s1543
          %s1545 = sand.u32 %s341, 1
          %s1546 = smul.addr %s1545, 8
          %s1547 = scalar_lea.vmem [#allocation2], %s1546
          %1548 = dma.done %s1544, 128
        $region88: #{tpu_custom_call.1} parent=83 // pred_fallthru
          _
      $region84: #{tpu_custom_call.1} parent=5 // pred_fallthru
        _
    $region6: #{tpu_custom_call.1} parent=1 // loop_footer
      %s27 = sadd.s32 1, %s23
    $region7: #{tpu_custom_call.1} parent=1 // loop_footer_branch
      %22 = sbr.rel target = $region3
    $region8: #{tpu_custom_call.1} parent=1 // loop_exit
      _
    %1549 = vsyncpa [#allocation3], 1
    %s1550 = scalar_lea.sflag [#allocation3], 1
    %1551 = vsyncpa %s1550, 1

</llo_original>
